<compile_context>
chip_gen: v5e
topology: v5e:2x2
jax: 0.10.0
libtpu: 0.0.40
codegen_flags: <defaults>
</compile_context>

<pallas_src>
import functools

import jax
import jax.numpy as jnp
from jax.experimental import pallas as pl
from jax.experimental.pallas import tpu as pltpu


_HIGHEST = jax.lax.Precision.HIGHEST


def _make_mlp_kernel(tb, sub):
    """Kernel over one (features, tb) batch block, processed in `sub`-lane chunks."""
    n_sub = tb // sub

    def kernel(yt_ref,
               w0_ref, b0_ref,
               w1_ref, b1_ref,
               w2_ref, b2_ref,
               w3_ref, b3_ref,
               w4_ref, b4_ref,
               o_ref):
        # Hoist weight/bias loads out of the sub-chunk loop (VMEM -> vreg once).
        w0a = w0_ref[:, 0:1]            # (30, 1)
        w0b = w0_ref[:, 1:2]            # (30, 1)
        b0 = b0_ref[...]                # (30, 1)  (pi/2 phase already folded in)
        w1 = w1_ref[...]; b1 = b1_ref[...]
        w2 = w2_ref[...]; b2 = b2_ref[...]
        w3 = w3_ref[...]; b3 = b3_ref[...]
        w4 = w4_ref[...]; b4 = b4_ref[...]

        for c in range(n_sub):          # static trip count -> fully unrolled
            lo = c * sub
            yt = yt_ref[:, lo:lo + sub]                     # (2, sub)

            # linear_start: K=2 -> two VPU broadcast multiply-adds.
            h = w0a * yt[0:1, :] + w0b * yt[1:2, :] + b0    # (30, sub)

            # cos folded into b0 rows 15..29 as +pi/2 phase -> single sin.
            x = jnp.sin(h)

            # linear_middle1..3 with tanh: (30,30) @ (30,sub) on the MXU.
            x = jnp.tanh(jnp.dot(w1, x, preferred_element_type=jnp.float32,
                                 precision=_HIGHEST) + b1)
            x = jnp.tanh(jnp.dot(w2, x, preferred_element_type=jnp.float32,
                                 precision=_HIGHEST) + b2)
            x = jnp.tanh(jnp.dot(w3, x, preferred_element_type=jnp.float32,
                                 precision=_HIGHEST) + b3)

            # linear_end: (1,30) @ (30,sub) + (1,1) -> lane-dense (1, sub) store.
            out = jnp.dot(w4, x, preferred_element_type=jnp.float32,
                          precision=_HIGHEST) + b4
            o_ref[:, lo:lo + sub] = out.astype(o_ref.dtype)

    return kernel


def _round_up(n, m):
    return ((n + m - 1) // m) * m


def _choose_tb(batch):
    """Pick the batch block: multiple of 128, <=2048, minimizing pad waste;
    ties broken toward larger blocks (fewer ~0.35us grid steps)."""
    candidates = (128, 256, 384, 512, 1024, 1536, 2048)
    best_tb, best_key = None, None
    for tb in candidates:
        pad = _round_up(batch, tb) - batch
        key = (pad, -tb)
        if best_key is None or key < best_key:
            best_key, best_tb = key, tb
    return best_tb


@jax.jit
def network_model_forward(y, params):
    """y: (B, 2) f32. params: PyTorch-style [(W (out,in), b (out,))] x 5."""
    (w0, b0), (w1, b1), (w2, b2), (w3, b3), (w4, b4) = params
    B = y.shape[0]

    TB = _choose_tb(B)
    SUB = min(TB, 512)                      # sub-chunk keeps vreg pressure bounded
    B_pad = _round_up(B, TB)
    grid = (B_pad // TB,)

    # Transpose batch onto lanes; zero-pad batch up to the padded size.
    # (Fuses with surrounding ops under jit -> single prologue.)
    yt = jnp.zeros((2, B_pad), y.dtype).at[:, :B].set(y.T)

    # Fold cos(z) = sin(z + pi/2) into rows 15..29 of b0.
    phase = jnp.concatenate([jnp.zeros((15,), jnp.float32),
                             jnp.full((15,), jnp.pi / 2, dtype=jnp.float32)])
    b0_c = (b0 + phase).reshape(30, 1)
    b1_c = b1.reshape(30, 1)
    b2_c = b2.reshape(30, 1)
    b3_c = b3.reshape(30, 1)
    b4_c = b4.reshape(1, 1)

    operands = [yt, w0, b0_c, w1, b1_c, w2, b2_c, w3, b3_c, w4, b4_c]

    # Weights/biases: full-array blocks with constant index maps -> DMA'd once,
    # VMEM-resident across the batch grid.
    def _resident(a):
        return pl.BlockSpec(a.shape, lambda i: (0, 0))

    in_specs = ([pl.BlockSpec((2, TB), lambda i: (0, i))]
                + [_resident(a) for a in operands[1:]])

    # Advisory cost hint for the XLA scheduler around the custom call.
    param_bytes = 4 * (2 * 30 + 30 + 3 * (30 * 30 + 30) + 30 + 1)
    cost = pl.CostEstimate(
        flops=B_pad * (2 * 2 * 30 + 3 * 2 * 30 * 30 + 2 * 30),
        transcendentals=B_pad * (30 + 3 * 30),
        bytes_accessed=B_pad * 12 + param_bytes,
    )

    out = pl.pallas_call(
        _make_mlp_kernel(TB, SUB),
        out_shape=jax.ShapeDtypeStruct((1, B_pad), jnp.float32),
        grid=grid,
        in_specs=in_specs,
        out_specs=pl.BlockSpec((1, TB), lambda i: (0, i)),
        compiler_params=pltpu.CompilerParams(
            dimension_semantics=("parallel",)),
        cost_estimate=cost,
    )(*operands)

    # Un-pad and restore the PyTorch (B, 1) shape (fuses into the epilogue).
    return out[0, :B].reshape(B, 1)


def init_params(key):
    """PyTorch-layout params: W (out, in), b (out,), U(-1/sqrt(fan_in), +)."""
    dims = [(2, 30), (30, 30), (30, 30), (30, 30), (30, 1)]
    params = []
    for fan_in, fan_out in dims:
        key, kw, kb = jax.random.split(key, 3)
        bound = 1.0 / float(fan_in) ** 0.5
        w = jax.random.uniform(kw, (fan_out, fan_in), jnp.float32, -bound, bound)
        b = jax.random.uniform(kb, (fan_out,), jnp.float32, -bound, bound)
        params.append((w, b))
    return params


def reference_forward(y, params):
    """Pure-JAX reference matching the PyTorch forward exactly (exact-f32 dots)."""
    (w0, b0), (w1, b1), (w2, b2), (w3, b3), (w4, b4) = params
    dot = functools.partial(jnp.dot, precision=_HIGHEST)
    h = dot(y, w0.T) + b0
    x = jnp.concatenate([jnp.sin(h[:, 0:15]), jnp.cos(h[:, 15:30])], axis=1)
    x = jnp.tanh(dot(x, w1.T) + b1)
    x = jnp.tanh(dot(x, w2.T) + b2)
    x = jnp.tanh(dot(x, w3.T) + b3)
    return dot(x, w4.T) + b4


if __name__ == "__main__":
    key = jax.random.PRNGKey(0)
    k_params, k_input = jax.random.split(key)

    params = init_params(k_params)
    y = jax.random.normal(k_input, (8, 2), dtype=jnp.float32)  # batch=8, feat=2

    out = jax.block_until_ready(network_model_forward(y, params))
    ref = reference_forward(y, params)

    assert out.shape == (8, 1), out.shape
    # pi/2 phase fold + exact-f32 (HIGHEST) MXU passes: agreement is ~1e-6;
    # 1e-4 tolerance is comfortable for f32.
    assert jnp.allclose(out, ref, atol=1e-4, rtol=1e-4), (out, ref)

    print("KERNEL_OK")
</pallas_src>

<mosaic_0001>
module attributes {stable_mosaic.version = 11 : i64} {
  func.func @kernel(%arg0: i32, %arg1: memref<2x128xf32, #tpu.memory_space<vmem>>, %arg2: memref<30x2xf32, #tpu.memory_space<vmem>>, %arg3: memref<30x1xf32, #tpu.memory_space<vmem>>, %arg4: memref<30x30xf32, #tpu.memory_space<vmem>>, %arg5: memref<30x1xf32, #tpu.memory_space<vmem>>, %arg6: memref<30x30xf32, #tpu.memory_space<vmem>>, %arg7: memref<30x1xf32, #tpu.memory_space<vmem>>, %arg8: memref<30x30xf32, #tpu.memory_space<vmem>>, %arg9: memref<30x1xf32, #tpu.memory_space<vmem>>, %arg10: memref<1x30xf32, #tpu.memory_space<vmem>>, %arg11: memref<1x1xf32, #tpu.memory_space<vmem>>, %arg12: memref<1x128xf32, #tpu.memory_space<vmem>>) attributes {dimension_semantics = [#tpu.dimension_semantics<parallel>], iteration_bounds = array<i64: 1>, scalar_prefetch = 0 : i64, scratch_operands = 0 : i64, tpu.core_type = #tpu.core_type<tc>, window_params = [{transform_indices = @transform_0, window_bounds = array<i64: 2, 128>}, {pipeline_mode = #tpu.pipeline_mode<synchronous>, transform_indices = @transform_1, window_bounds = array<i64: 30, 2>}, {pipeline_mode = #tpu.pipeline_mode<synchronous>, transform_indices = @transform_2, window_bounds = array<i64: 30, 1>}, {pipeline_mode = #tpu.pipeline_mode<synchronous>, transform_indices = @transform_3, window_bounds = array<i64: 30, 30>}, {pipeline_mode = #tpu.pipeline_mode<synchronous>, transform_indices = @transform_4, window_bounds = array<i64: 30, 1>}, {pipeline_mode = #tpu.pipeline_mode<synchronous>, transform_indices = @transform_5, window_bounds = array<i64: 30, 30>}, {pipeline_mode = #tpu.pipeline_mode<synchronous>, transform_indices = @transform_6, window_bounds = array<i64: 30, 1>}, {pipeline_mode = #tpu.pipeline_mode<synchronous>, transform_indices = @transform_7, window_bounds = array<i64: 30, 30>}, {pipeline_mode = #tpu.pipeline_mode<synchronous>, transform_indices = @transform_8, window_bounds = array<i64: 30, 1>}, {pipeline_mode = #tpu.pipeline_mode<synchronous>, transform_indices = @transform_9, window_bounds = array<i64: 1, 30>}, {pipeline_mode = #tpu.pipeline_mode<synchronous>, transform_indices = @transform_10, window_bounds = array<i64: 1, 1>}, {transform_indices = @transform_11, window_bounds = array<i64: 1, 128>}]} {
    %c0 = arith.constant 0 : index
    %c0_0 = arith.constant 0 : index
    %0 = vector.load %arg2[%c0, %c0_0] : memref<30x2xf32, #tpu.memory_space<vmem>>, vector<30x1xf32>
    %c0_1 = arith.constant 0 : index
    %c1 = arith.constant 1 : index
    %1 = vector.load %arg2[%c0_1, %c1] : memref<30x2xf32, #tpu.memory_space<vmem>>, vector<30x1xf32>
    %c0_2 = arith.constant 0 : index
    %c0_3 = arith.constant 0 : index
    %2 = vector.load %arg3[%c0_2, %c0_3] : memref<30x1xf32, #tpu.memory_space<vmem>>, vector<30x1xf32>
    %c0_4 = arith.constant 0 : index
    %c0_5 = arith.constant 0 : index
    %3 = vector.load %arg4[%c0_4, %c0_5] : memref<30x30xf32, #tpu.memory_space<vmem>>, vector<30x30xf32>
    %c0_6 = arith.constant 0 : index
    %c0_7 = arith.constant 0 : index
    %4 = vector.load %arg5[%c0_6, %c0_7] : memref<30x1xf32, #tpu.memory_space<vmem>>, vector<30x1xf32>
    %c0_8 = arith.constant 0 : index
    %c0_9 = arith.constant 0 : index
    %5 = vector.load %arg6[%c0_8, %c0_9] : memref<30x30xf32, #tpu.memory_space<vmem>>, vector<30x30xf32>
    %c0_10 = arith.constant 0 : index
    %c0_11 = arith.constant 0 : index
    %6 = vector.load %arg7[%c0_10, %c0_11] : memref<30x1xf32, #tpu.memory_space<vmem>>, vector<30x1xf32>
    %c0_12 = arith.constant 0 : index
    %c0_13 = arith.constant 0 : index
    %7 = vector.load %arg8[%c0_12, %c0_13] : memref<30x30xf32, #tpu.memory_space<vmem>>, vector<30x30xf32>
    %c0_14 = arith.constant 0 : index
    %c0_15 = arith.constant 0 : index
    %8 = vector.load %arg9[%c0_14, %c0_15] : memref<30x1xf32, #tpu.memory_space<vmem>>, vector<30x1xf32>
    %c0_16 = arith.constant 0 : index
    %c0_17 = arith.constant 0 : index
    %9 = vector.load %arg10[%c0_16, %c0_17] : memref<1x30xf32, #tpu.memory_space<vmem>>, vector<1x30xf32>
    %c0_18 = arith.constant 0 : index
    %c0_19 = arith.constant 0 : index
    %10 = vector.load %arg11[%c0_18, %c0_19] : memref<1x1xf32, #tpu.memory_space<vmem>>, vector<1x1xf32>
    %c0_20 = arith.constant 0 : index
    %c0_21 = arith.constant 0 : index
    %11 = vector.load %arg1[%c0_20, %c0_21] : memref<2x128xf32, #tpu.memory_space<vmem>>, vector<2x128xf32>
    %12 = vector.extract_strided_slice %11 {offsets = [0, 0], sizes = [1, 128], strides = [1, 1]} : vector<2x128xf32> to vector<1x128xf32>
    %13 = vector.broadcast %0 : vector<30x1xf32> to vector<30x128xf32>
    %14 = vector.broadcast %12 : vector<1x128xf32> to vector<30x128xf32>
    %15 = arith.mulf %13, %14 : vector<30x128xf32>
    %16 = vector.extract_strided_slice %11 {offsets = [1, 0], sizes = [1, 128], strides = [1, 1]} : vector<2x128xf32> to vector<1x128xf32>
    %17 = vector.broadcast %1 : vector<30x1xf32> to vector<30x128xf32>
    %18 = vector.broadcast %16 : vector<1x128xf32> to vector<30x128xf32>
    %19 = arith.mulf %17, %18 : vector<30x128xf32>
    %20 = arith.addf %15, %19 : vector<30x128xf32>
    %21 = vector.broadcast %2 : vector<30x1xf32> to vector<30x128xf32>
    %22 = arith.addf %20, %21 : vector<30x128xf32>
    %23 = math.sin %22 : vector<30x128xf32>
    %cst = arith.constant dense<0.000000e+00> : vector<30x128xf32>
    %24 = tpu.matmul %3, %23, %cst {dimension_numbers = #tpu.dot_dimension_numbers<[1], [0], [0], [1], [0, 0, 1, 1], [], []>, precision = #tpu.contract_precision<fp32>} : vector<30x30xf32>, vector<30x128xf32>, vector<30x128xf32> -> vector<30x128xf32>
    %25 = vector.broadcast %4 : vector<30x1xf32> to vector<30x128xf32>
    %26 = arith.addf %24, %25 : vector<30x128xf32>
    %27 = math.tanh %26 : vector<30x128xf32>
    %cst_22 = arith.constant dense<0.000000e+00> : vector<30x128xf32>
    %28 = tpu.matmul %5, %27, %cst_22 {dimension_numbers = #tpu.dot_dimension_numbers<[1], [0], [0], [1], [0, 0, 1, 1], [], []>, precision = #tpu.contract_precision<fp32>} : vector<30x30xf32>, vector<30x128xf32>, vector<30x128xf32> -> vector<30x128xf32>
    %29 = vector.broadcast %6 : vector<30x1xf32> to vector<30x128xf32>
    %30 = arith.addf %28, %29 : vector<30x128xf32>
    %31 = math.tanh %30 : vector<30x128xf32>
    %cst_23 = arith.constant dense<0.000000e+00> : vector<30x128xf32>
    %32 = tpu.matmul %7, %31, %cst_23 {dimension_numbers = #tpu.dot_dimension_numbers<[1], [0], [0], [1], [0, 0, 1, 1], [], []>, precision = #tpu.contract_precision<fp32>} : vector<30x30xf32>, vector<30x128xf32>, vector<30x128xf32> -> vector<30x128xf32>
    %33 = vector.broadcast %8 : vector<30x1xf32> to vector<30x128xf32>
    %34 = arith.addf %32, %33 : vector<30x128xf32>
    %35 = math.tanh %34 : vector<30x128xf32>
    %cst_24 = arith.constant dense<0.000000e+00> : vector<1x128xf32>
    %36 = tpu.matmul %9, %35, %cst_24 {dimension_numbers = #tpu.dot_dimension_numbers<[1], [0], [0], [1], [0, 0, 1, 1], [], []>, precision = #tpu.contract_precision<fp32>} : vector<1x30xf32>, vector<30x128xf32>, vector<1x128xf32> -> vector<1x128xf32>
    %37 = vector.broadcast %10 : vector<1x1xf32> to vector<1x128xf32>
    %38 = arith.addf %36, %37 : vector<1x128xf32>
    %c0_25 = arith.constant 0 : index
    %c0_26 = arith.constant 0 : index
    %39 = vector.load %arg12[%c0_25, %c0_26] : memref<1x128xf32, #tpu.memory_space<vmem>>, vector<1x128xf32>
    tpu.vector_store %arg12[%c0_25, %c0_26], %38 {strides = array<i32>} : memref<1x128xf32, #tpu.memory_space<vmem>>, vector<1x128xf32>,
    return
  }
  func.func @transform_0(%arg0: i32) -> (i32, i32) {
    %c0_i32 = arith.constant 0 : i32
    %c0_i32_0 = arith.constant 0 : i32
    return %c0_i32, %arg0 : i32, i32
  }
  func.func @transform_1(%arg0: i32) -> (i32, i32) {
    %c0_i32 = arith.constant 0 : i32
    %c0_i32_0 = arith.constant 0 : i32
    %c0_i32_1 = arith.constant 0 : i32
    return %c0_i32, %c0_i32_0 : i32, i32
  }
  func.func @transform_2(%arg0: i32) -> (i32, i32) {
    %c0_i32 = arith.constant 0 : i32
    %c0_i32_0 = arith.constant 0 : i32
    %c0_i32_1 = arith.constant 0 : i32
    return %c0_i32, %c0_i32_0 : i32, i32
  }
  func.func @transform_3(%arg0: i32) -> (i32, i32) {
    %c0_i32 = arith.constant 0 : i32
    %c0_i32_0 = arith.constant 0 : i32
    %c0_i32_1 = arith.constant 0 : i32
    return %c0_i32, %c0_i32_0 : i32, i32
  }
  func.func @transform_4(%arg0: i32) -> (i32, i32) {
    %c0_i32 = arith.constant 0 : i32
    %c0_i32_0 = arith.constant 0 : i32
    %c0_i32_1 = arith.constant 0 : i32
    return %c0_i32, %c0_i32_0 : i32, i32
  }
  func.func @transform_5(%arg0: i32) -> (i32, i32) {
    %c0_i32 = arith.constant 0 : i32
    %c0_i32_0 = arith.constant 0 : i32
    %c0_i32_1 = arith.constant 0 : i32
    return %c0_i32, %c0_i32_0 : i32, i32
  }
  func.func @transform_6(%arg0: i32) -> (i32, i32) {
    %c0_i32 = arith.constant 0 : i32
    %c0_i32_0 = arith.constant 0 : i32
    %c0_i32_1 = arith.constant 0 : i32
    return %c0_i32, %c0_i32_0 : i32, i32
  }
  func.func @transform_7(%arg0: i32) -> (i32, i32) {
    %c0_i32 = arith.constant 0 : i32
    %c0_i32_0 = arith.constant 0 : i32
    %c0_i32_1 = arith.constant 0 : i32
    return %c0_i32, %c0_i32_0 : i32, i32
  }
  func.func @transform_8(%arg0: i32) -> (i32, i32) {
    %c0_i32 = arith.constant 0 : i32
    %c0_i32_0 = arith.constant 0 : i32
    %c0_i32_1 = arith.constant 0 : i32
    return %c0_i32, %c0_i32_0 : i32, i32
  }
  func.func @transform_9(%arg0: i32) -> (i32, i32) {
    %c0_i32 = arith.constant 0 : i32
    %c0_i32_0 = arith.constant 0 : i32
    %c0_i32_1 = arith.constant 0 : i32
    return %c0_i32, %c0_i32_0 : i32, i32
  }
  func.func @transform_10(%arg0: i32) -> (i32, i32) {
    %c0_i32 = arith.constant 0 : i32
    %c0_i32_0 = arith.constant 0 : i32
    %c0_i32_1 = arith.constant 0 : i32
    return %c0_i32, %c0_i32_0 : i32, i32
  }
  func.func @transform_11(%arg0: i32) -> (i32, i32) {
    %c0_i32 = arith.constant 0 : i32
    %c0_i32_0 = arith.constant 0 : i32
    return %c0_i32, %arg0 : i32, i32
  }
}

</mosaic_0001>

<llo_original>
// kernel: network_model_forward.1
$region0: #{network_model_forward.1}
  #allocation0 [shape = 'u32[]', space=smem, size = 0x4, offset = 0x4, fixed_abs, tag = 'smem constant byte address 0x4 - core index']
  #allocation1 [shape = 'u32[72,128]{1,0:T(1,128)}', space=vmem, size = 0x9000, scoped, tag = 'internal scratch']
  #allocation2 [shape = 'f32[1,1]{1,0:T(1,128)S(1)}', space=vmem, size = 0x200, scoped, tag = 'scoped memory for network_model_forward.1']
  %s0 = inlined_call_operand.vmem [shape: f32[2,128], index: 0, kind: input, shape index: {}]
  %s1 = inlined_call_operand.vmem [shape: f32[30,2], index: 1, kind: input, shape index: {}]
  %s2 = inlined_call_operand.vmem [shape: f32[30,1], index: 2, kind: input, shape index: {}]
  %s3 = inlined_call_operand.vmem [shape: f32[30,30], index: 3, kind: input, shape index: {}]
  %s4 = inlined_call_operand.vmem [shape: f32[30,1], index: 4, kind: input, shape index: {}]
  %s5 = inlined_call_operand.vmem [shape: f32[30,30], index: 5, kind: input, shape index: {}]
  %s6 = inlined_call_operand.vmem [shape: f32[30,1], index: 6, kind: input, shape index: {}]
  %s7 = inlined_call_operand.vmem [shape: f32[30,30], index: 7, kind: input, shape index: {}]
  %s8 = inlined_call_operand.vmem [shape: f32[30,1], index: 8, kind: input, shape index: {}]
  %s9 = inlined_call_operand.vmem [shape: f32[1,30], index: 9, kind: input, shape index: {}]
  %s10 = inlined_call_operand.<no memory space> [shape: f32[1,1], index: 10, kind: input, shape index: {}]
  %s11 = inlined_call_operand.vmem [shape: f32[1,128], index: 11, kind: output, shape index: {}]
  %s12 = sld [smem:[#allocation0]]
  $region54: #{network_model_forward.1} parent=0
    _
  %s14 = ssub.s32 1, %s12
  %s15 = scalar_select 0, %s14, %s12
  %v16 = vstv %s10
  %17 = vst [vmem:[#allocation2] sm:$0x1] %v16
  // Predicated region
  $region2: #{network_model_forward.1} parent=0 // pred_check
    _
  $region3: #{network_model_forward.1} parent=0 // pred_check_branch
    %19 = sbr.rel (0) target = $region5
  $region4: #{network_model_forward.1} parent=0 // pred_region
    _
  $region5: #{network_model_forward.1} parent=0 // pred_fallthru
    _
  // Predicated region
  $region6: #{network_model_forward.1} parent=0 // pred_check
    _
  $region7: #{network_model_forward.1} parent=0 // pred_check_branch
    %21 = sbr.rel (0) target = $region9
  $region8: #{network_model_forward.1} parent=0 // pred_region
    _
  $region9: #{network_model_forward.1} parent=0 // pred_fallthru
    _
  // Predicated region
  $region10: #{network_model_forward.1} parent=0 // pred_check
    _
  $region11: #{network_model_forward.1} parent=0 // pred_check_branch
    %23 = sbr.rel (0) target = $region13
  $region12: #{network_model_forward.1} parent=0 // pred_region
    _
  $region13: #{network_model_forward.1} parent=0 // pred_fallthru
    _
  // Predicated region
  $region14: #{network_model_forward.1} parent=0 // pred_check
    _
  $region15: #{network_model_forward.1} parent=0 // pred_check_branch
    %25 = sbr.rel (0) target = $region17
  $region16: #{network_model_forward.1} parent=0 // pred_region
    _
  $region17: #{network_model_forward.1} parent=0 // pred_fallthru
    _
  // Predicated region
  $region18: #{network_model_forward.1} parent=0 // pred_check
    _
  $region19: #{network_model_forward.1} parent=0 // pred_check_branch
    %27 = sbr.rel (0) target = $region21
  $region20: #{network_model_forward.1} parent=0 // pred_region
    _
  $region21: #{network_model_forward.1} parent=0 // pred_fallthru
    _
  // Predicated region
  $region22: #{network_model_forward.1} parent=0 // pred_check
    _
  $region23: #{network_model_forward.1} parent=0 // pred_check_branch
    %29 = sbr.rel (0) target = $region25
  $region24: #{network_model_forward.1} parent=0 // pred_region
    _
  $region25: #{network_model_forward.1} parent=0 // pred_fallthru
    _
  // Predicated region
  $region26: #{network_model_forward.1} parent=0 // pred_check
    _
  $region27: #{network_model_forward.1} parent=0 // pred_check_branch
    %31 = sbr.rel (0) target = $region29
  $region28: #{network_model_forward.1} parent=0 // pred_region
    _
  $region29: #{network_model_forward.1} parent=0 // pred_fallthru
    _
  // Predicated region
  $region30: #{network_model_forward.1} parent=0 // pred_check
    _
  $region31: #{network_model_forward.1} parent=0 // pred_check_branch
    %33 = sbr.rel (0) target = $region33
  $region32: #{network_model_forward.1} parent=0 // pred_region
    _
  $region33: #{network_model_forward.1} parent=0 // pred_fallthru
    _
  // Predicated region
  $region34: #{network_model_forward.1} parent=0 // pred_check
    _
  $region35: #{network_model_forward.1} parent=0 // pred_check_branch
    %35 = sbr.rel (0) target = $region37
  $region36: #{network_model_forward.1} parent=0 // pred_region
    _
  $region37: #{network_model_forward.1} parent=0 // pred_fallthru
    _
  // Predicated region
  $region38: #{network_model_forward.1} parent=0 // pred_check
    _
  $region39: #{network_model_forward.1} parent=0 // pred_check_branch
    %37 = sbr.rel (0) target = $region41
  $region40: #{network_model_forward.1} parent=0 // pred_region
    _
  $region41: #{network_model_forward.1} parent=0 // pred_fallthru
    _
  // Predicated region
  $region42: #{network_model_forward.1} parent=0 // pred_check
    _
  $region43: #{network_model_forward.1} parent=0 // pred_check_branch
    %39 = sbr.rel (0) target = $region45
  $region44: #{network_model_forward.1} parent=0 // pred_region
    _
  $region45: #{network_model_forward.1} parent=0 // pred_fallthru
    _
  %v40 = vld [vmem:[%s1] sm:$0xff]
  %v41 = vld [vmem:[%s1 + $0x8] sm:$0xff]
  %v42 = vld [vmem:[%s1 + $0x10] sm:$0xff]
  %v43 = vld [vmem:[%s1 + $0x18] sm:$0x3f]
  %v44 = vld [vmem:[%s2] sm:$0xff]
  %v45 = vld [vmem:[%s2 + $0x8] sm:$0xff]
  %v46 = vld [vmem:[%s2 + $0x10] sm:$0xff]
  %v47 = vld [vmem:[%s2 + $0x18] sm:$0x3f]
  %v48 = vld [vmem:[%s3] sm:$0xff]
  %v49 = vld [vmem:[%s3 + $0x8] sm:$0xff]
  %v50 = vld [vmem:[%s3 + $0x10] sm:$0xff]
  %v51 = vld [vmem:[%s3 + $0x18] sm:$0x3f]
  %v52 = vld [vmem:[%s4] sm:$0xff]
  %v53 = vld [vmem:[%s4 + $0x8] sm:$0xff]
  %v54 = vld [vmem:[%s4 + $0x10] sm:$0xff]
  %v55 = vld [vmem:[%s4 + $0x18] sm:$0x3f]
  %v56 = vld [vmem:[%s5] sm:$0xff]
  %v57 = vld [vmem:[%s5 + $0x8] sm:$0xff]
  %v58 = vld [vmem:[%s5 + $0x10] sm:$0xff]
  %v59 = vld [vmem:[%s5 + $0x18] sm:$0x3f]
  %v60 = vld [vmem:[%s6] sm:$0xff]
  %v61 = vld [vmem:[%s6 + $0x8] sm:$0xff]
  %v62 = vld [vmem:[%s6 + $0x10] sm:$0xff]
  %v63 = vld [vmem:[%s6 + $0x18] sm:$0x3f]
  %v64 = vld [vmem:[%s7] sm:$0xff]
  %v65 = vld [vmem:[%s7 + $0x8] sm:$0xff]
  %v66 = vld [vmem:[%s7 + $0x10] sm:$0xff]
  %v67 = vld [vmem:[%s7 + $0x18] sm:$0x3f]
  %v68 = vld [vmem:[%s8] sm:$0xff]
  %v69 = vld [vmem:[%s8 + $0x8] sm:$0xff]
  %v70 = vld [vmem:[%s8 + $0x10] sm:$0xff]
  %v71 = vld [vmem:[%s8 + $0x18] sm:$0x3f]
  %v72 = vld [vmem:[%s9] sm:$0x1]
  %v73 = vld [vmem:[#allocation2] sm:$0x1]
  %v74 = vld [vmem:[%s0] sm:$0x3]
  %76 = vset.pattern.permute.xlu0 0
  %77 = vperm.xlu0 %76, %v40
  %v78 = vpop.permute.xlu0 %77
  %81 = vset.pattern.permute.xlu0 0
  %82 = vperm.xlu0 %81, %v41
  %v83 = vpop.permute.xlu0 %82
  %86 = vset.pattern.permute.xlu0 0
  %87 = vperm.xlu0 %86, %v42
  %v88 = vpop.permute.xlu0 %87
  %91 = vset.pattern.permute.xlu0 0
  %92 = vperm.xlu0 %91, %v43
  %v93 = vpop.permute.xlu0 %92
  %v95 = vperm.slane %v74, 0
  %v96 = vmul.f32 %v78, %v95
  %v97 = vmul.f32 %v83, %v95
  %v98 = vmul.f32 %v88, %v95
  %v99 = vmul.f32 %v93, %v95
  %100 = vset.pattern.permute.xlu0 1
  %101 = vperm.xlu0 %100, %v40
  %v102 = vpop.permute.xlu0 %101
  %104 = vset.pattern.permute.xlu0 1
  %105 = vperm.xlu0 %104, %v41
  %v106 = vpop.permute.xlu0 %105
  %108 = vset.pattern.permute.xlu0 1
  %109 = vperm.xlu0 %108, %v42
  %v110 = vpop.permute.xlu0 %109
  %112 = vset.pattern.permute.xlu0 1
  %113 = vperm.xlu0 %112, %v43
  %v114 = vpop.permute.xlu0 %113
  %v116 = vperm.slane %v74, 1
  %v117 = vmul.f32 %v102, %v116
  %v118 = vmul.f32 %v106, %v116
  %v119 = vmul.f32 %v110, %v116
  %v120 = vmul.f32 %v114, %v116
  %v121 = vadd.f32 %v96, %v117
  %v122 = vadd.f32 %v97, %v118
  %v123 = vadd.f32 %v98, %v119
  %v124 = vadd.f32 %v99, %v120
  %126 = vset.pattern.permute.xlu0 0
  %127 = vperm.xlu0 %126, %v44
  %v128 = vpop.permute.xlu0 %127
  %131 = vset.pattern.permute.xlu0 0
  %132 = vperm.xlu0 %131, %v45
  %v133 = vpop.permute.xlu0 %132
  %136 = vset.pattern.permute.xlu0 0
  %137 = vperm.xlu0 %136, %v46
  %v138 = vpop.permute.xlu0 %137
  %141 = vset.pattern.permute.xlu0 0
  %142 = vperm.xlu0 %141, %v47
  %v143 = vpop.permute.xlu0 %142
  %v145 = vadd.f32 %v121, %v128
  %v146 = vadd.f32 %v122, %v133
  %v147 = vadd.f32 %v123, %v138
  %v148 = vadd.f32 %v124, %v143
  %v149 = vand.u32 2147483647, %v145
  %vm150 = vcmp.le.f32.partialorder %v149, 0.7853982
  %vm151 = vcmp.lt.s32.totalorder %v145, 0
  %v152 = vand.u32 %v145, 2139095040
  %v153 = vshrl.u32 %v152, 23
  %v154 = vsub.s32 %v153, 127
  %v155 = vand.u32 2147483647, %v145
  %v156 = vand.u32 %v155, 8388607
  %v157 = vor.u32 %v156, 8388608
  %v158 = vsub.s32 0, %v157
  %v159 = vadd.s32 %v154, 1
  %vm160 = vcmp.gt.s32.totalorder %v159, 0
  %v161 = vsel %vm160, %v159, 0
  %v162 = vshrl.u32 %v161, 5
  %v163 = vand.u32 %v161, 31
  %v164 = vsub.s32 32, %v163
  %v165 = vshrl.u32 683565275, %v164
  %v166 = vshll.u32 683565275, %v163
  %v167 = vshrl.u32 2475754826, %v164
  %v168 = vor.u32 %v166, %v167
  %v169 = vshll.u32 2475754826, %v163
  %v170 = vshrl.u32 2131351028, %v164
  %v171 = vor.u32 %v169, %v170
  %v172 = vshll.u32 2131351028, %v163
  %v173 = vshrl.u32 2102212464, %v164
  %v174 = vor.u32 %v172, %v173
  %v175 = vshll.u32 2102212464, %v163
  %v176 = vshrl.u32 920167782, %v164
  %v177 = vor.u32 %v175, %v176
  %v178 = vshll.u32 920167782, %v163
  %v179 = vshrl.u32 1326507024, %v164
  %v180 = vor.u32 %v178, %v179
  %vm181 = vcmp.lt.s32.totalorder %v162, 1
  %vm182 = vcmp.lt.s32.totalorder %v162, 2
  %vm183 = vcmp.lt.s32.totalorder %v162, 3
  %vm184 = vcmp.lt.s32.totalorder %v162, 4
  %v185 = vsel %vm181, %v165, %v168
  %v186 = vsel %vm184, %v174, 2102212464
  %v187 = vsel %vm183, %v171, %v186
  %v188 = vsel %vm182, %v185, %v187
  %v189 = vsel %vm181, %v168, %v171
  %v190 = vsel %vm184, %v177, 920167782
  %v191 = vsel %vm183, %v174, %v190
  %v192 = vsel %vm182, %v189, %v191
  %v193 = vsel %vm181, %v171, %v174
  %v194 = vsel %vm184, %v180, 1326507024
  %v195 = vsel %vm183, %v177, %v194
  %v196 = vsel %vm182, %v193, %v195
  %v197 = vshll.u32 %v157, 8
  %v198 = vand.u32 %v197, 65535
  %v199 = vshrl.u32 %v197, 16
  %v200 = vand.u32 %v196, 65535
  %v201 = vshrl.u32 %v196, 16
  %v202 = vmul.u32 %v198, %v200
  %v203 = vmul.u32 %v198, %v201
  %v204 = vmul.u32 %v199, %v200
  %v205 = vmul.u32 %v199, %v201
  %v206 = vshll.u32 %v203, 16
  %v207 = vshrl.u32 %v203, 16
  %v208 = vshll.u32 %v204, 16
  %v209 = vshrl.u32 %v204, 16
  %vm210 = vc.u32 %v202, %v206
  %v211 = vsel %vm210, 1, 0
  %v212 = vadd.s32 %v202, %v206
  %v213 = vadd.s32 %v205, %v211
  %vm214 = vc.u32 %v212, %v208
  %v215 = vsel %vm214, 1, 0
  %v216 = vadd.s32 %v212, %v208
  %v217 = vadd.s32 %v213, %v215
  %v218 = vadd.s32 %v217, %v207
  %v219 = vadd.s32 %v218, %v209
  %v220 = vand.u32 %v197, 65535
  %v221 = vshrl.u32 %v197, 16
  %v222 = vand.u32 %v192, 65535
  %v223 = vshrl.u32 %v192, 16
  %v224 = vmul.u32 %v220, %v222
  %v225 = vmul.u32 %v220, %v223
  %v226 = vmul.u32 %v221, %v222
  %v227 = vmul.u32 %v221, %v223
  %v228 = vshll.u32 %v225, 16
  %v229 = vshrl.u32 %v225, 16
  %v230 = vshll.u32 %v226, 16
  %v231 = vshrl.u32 %v226, 16
  %vm232 = vc.u32 %v224, %v228
  %v233 = vsel %vm232, 1, 0
  %v234 = vadd.s32 %v224, %v228
  %v235 = vadd.s32 %v227, %v233
  %vm236 = vc.u32 %v234, %v230
  %v237 = vsel %vm236, 1, 0
  %v238 = vadd.s32 %v234, %v230
  %v239 = vadd.s32 %v235, %v237
  %v240 = vadd.s32 %v239, %v229
  %v241 = vadd.s32 %v240, %v231
  %v242 = vmul.u32 %v197, %v188
  %v243 = vadd.s32 %v219, %v238
  %vm244 = vc.u32 %v219, %v238
  %v245 = vadd.s32 %v241, 1
  %v246 = vsel %vm244, %v245, %v241
  %v247 = vadd.s32 %v242, %v246
  %v248 = vadd.s32 %v247, 536870912
  %v249 = vshrl.u32 %v248, 30
  %v250 = vshll.u32 %v249, 30
  %v251 = vsub.s32 %v247, %v250
  %vm252 = vcmp.lt.s32.totalorder %v251, 0
  %v253 = vsub.s32 0, %v251
  %v254 = vsel %vm252, %v253, %v251
  %v255 = vclz %v254
  %v256 = vsub.s32 %v255, 2
  %vm257 = vcmp.gt.s32.totalorder 0, %v256
  %v258 = vsel %vm257, 0, %v256
  %v259 = vsub.s32 32, %v258
  %v260 = vshll.u32 %v251, %v258
  %v261 = vshrl.u32 %v243, %v259
  %v262 = vor.u32 %v260, %v261
  %v263 = vsub.s32 4294967266, %v258
  %v264 = vadd.s32 %v263, 127
  %v265 = vshll.u32 %v264, 23
  %v266 = vor.u32 4788187, %v265
  %v267 = vand.u32 2147483647, %v266
  %v269 = vcvt.s32.f32 %v262
  %v270 = vmul.f32 %v269, %v267
  %v271 = vxor.u32 %v270, 2147483648
  %v272 = vsel %vm151, %v271, %v270
  %v273 = vsub.s32 4, %v249
  %v274 = vsel %vm151, %v273, %v249
  %v275 = vsel %vm150, %v145, %v272
  %v276 = vsel %vm150, 0, %v274
  %v277 = vmul.f32 %v275, %v275
  %v278 = vmul.f32 %v277, -0.001358992
  %v279 = vadd.f32 %v278, 0.041655596
  %v280 = vmul.f32 %v277, %v279
  %v281 = vadd.f32 %v280, -0.4999988
  %v282 = vmul.f32 %v277, %v281
  %v283 = vadd.f32 1.0, %v282
  %v284 = vmul.f32 %v275, %v275
  %v285 = vmul.f32 %v284, -0.00019511016
  %v286 = vadd.f32 %v285, 0.008332121
  %v287 = vmul.f32 %v284, %v286
  %v288 = vadd.f32 %v287, -0.16666654
  %v289 = vmul.f32 %v284, %v288
  %v290 = vadd.f32 %v289, 1.0
  %v291 = vmul.f32 %v290, %v275
  %vm292 = vweird.f32 %v145
  %v293 = vadd.s32 %v276, 3
  %v294 = vand.u32 %v293, 3
  %vm295 = vcmp.lt.s32.totalorder %v294, 2
  %vm296 = vcmp.eq.s32.totalorder %v294, 0
  %v297 = vxor.u32 %v291, 2147483648
  %v298 = vsel %vm296, %v283, %v297
  %vm299 = vcmp.eq.s32.totalorder %v294, 2
  %v300 = vxor.u32 %v283, 2147483648
  %v301 = vsel %vm299, %v300, %v291
  %v302 = vsel %vm295, %v298, %v301
  %v303 = vsel %vm292, nan, %v302
  %v304 = vand.u32 2147483647, %v146
  %vm305 = vcmp.le.f32.partialorder %v304, 0.7853982
  %vm306 = vcmp.lt.s32.totalorder %v146, 0
  %v307 = vand.u32 %v146, 2139095040
  %v308 = vshrl.u32 %v307, 23
  %v309 = vsub.s32 %v308, 127
  %v310 = vand.u32 2147483647, %v146
  %v311 = vand.u32 %v310, 8388607
  %v312 = vor.u32 %v311, 8388608
  %v313 = vsub.s32 0, %v312
  %v314 = vadd.s32 %v309, 1
  %vm315 = vcmp.gt.s32.totalorder %v314, 0
  %v316 = vsel %vm315, %v314, 0
  %v317 = vshrl.u32 %v316, 5
  %v318 = vand.u32 %v316, 31
  %v319 = vsub.s32 32, %v318
  %v320 = vshrl.u32 683565275, %v319
  %v321 = vshll.u32 683565275, %v318
  %v322 = vshrl.u32 2475754826, %v319
  %v323 = vor.u32 %v321, %v322
  %v324 = vshll.u32 2475754826, %v318
  %v325 = vshrl.u32 2131351028, %v319
  %v326 = vor.u32 %v324, %v325
  %v327 = vshll.u32 2131351028, %v318
  %v328 = vshrl.u32 2102212464, %v319
  %v329 = vor.u32 %v327, %v328
  %v330 = vshll.u32 2102212464, %v318
  %v331 = vshrl.u32 920167782, %v319
  %v332 = vor.u32 %v330, %v331
  %v333 = vshll.u32 920167782, %v318
  %v334 = vshrl.u32 1326507024, %v319
  %v335 = vor.u32 %v333, %v334
  %vm336 = vcmp.lt.s32.totalorder %v317, 1
  %vm337 = vcmp.lt.s32.totalorder %v317, 2
  %vm338 = vcmp.lt.s32.totalorder %v317, 3
  %vm339 = vcmp.lt.s32.totalorder %v317, 4
  %v340 = vsel %vm336, %v320, %v323
  %v341 = vsel %vm339, %v329, 2102212464
  %v342 = vsel %vm338, %v326, %v341
  %v343 = vsel %vm337, %v340, %v342
  %v344 = vsel %vm336, %v323, %v326
  %v345 = vsel %vm339, %v332, 920167782
  %v346 = vsel %vm338, %v329, %v345
  %v347 = vsel %vm337, %v344, %v346
  %v348 = vsel %vm336, %v326, %v329
  %v349 = vsel %vm339, %v335, 1326507024
  %v350 = vsel %vm338, %v332, %v349
  %v351 = vsel %vm337, %v348, %v350
  %v352 = vshll.u32 %v312, 8
  %v353 = vand.u32 %v352, 65535
  %v354 = vshrl.u32 %v352, 16
  %v355 = vand.u32 %v351, 65535
  %v356 = vshrl.u32 %v351, 16
  %v357 = vmul.u32 %v353, %v355
  %v358 = vmul.u32 %v353, %v356
  %v359 = vmul.u32 %v354, %v355
  %v360 = vmul.u32 %v354, %v356
  %v361 = vshll.u32 %v358, 16
  %v362 = vshrl.u32 %v358, 16
  %v363 = vshll.u32 %v359, 16
  %v364 = vshrl.u32 %v359, 16
  %vm365 = vc.u32 %v357, %v361
  %v366 = vsel %vm365, 1, 0
  %v367 = vadd.s32 %v357, %v361
  %v368 = vadd.s32 %v360, %v366
  %vm369 = vc.u32 %v367, %v363
  %v370 = vsel %vm369, 1, 0
  %v371 = vadd.s32 %v367, %v363
  %v372 = vadd.s32 %v368, %v370
  %v373 = vadd.s32 %v372, %v362
  %v374 = vadd.s32 %v373, %v364
  %v375 = vand.u32 %v352, 65535
  %v376 = vshrl.u32 %v352, 16
  %v377 = vand.u32 %v347, 65535
  %v378 = vshrl.u32 %v347, 16
  %v379 = vmul.u32 %v375, %v377
  %v380 = vmul.u32 %v375, %v378
  %v381 = vmul.u32 %v376, %v377
  %v382 = vmul.u32 %v376, %v378
  %v383 = vshll.u32 %v380, 16
  %v384 = vshrl.u32 %v380, 16
  %v385 = vshll.u32 %v381, 16
  %v386 = vshrl.u32 %v381, 16
  %vm387 = vc.u32 %v379, %v383
  %v388 = vsel %vm387, 1, 0
  %v389 = vadd.s32 %v379, %v383
  %v390 = vadd.s32 %v382, %v388
  %vm391 = vc.u32 %v389, %v385
  %v392 = vsel %vm391, 1, 0
  %v393 = vadd.s32 %v389, %v385
  %v394 = vadd.s32 %v390, %v392
  %v395 = vadd.s32 %v394, %v384
  %v396 = vadd.s32 %v395, %v386
  %v397 = vmul.u32 %v352, %v343
  %v398 = vadd.s32 %v374, %v393
  %vm399 = vc.u32 %v374, %v393
  %v400 = vadd.s32 %v396, 1
  %v401 = vsel %vm399, %v400, %v396
  %v402 = vadd.s32 %v397, %v401
  %v403 = vadd.s32 %v402, 536870912
  %v404 = vshrl.u32 %v403, 30
  %v405 = vshll.u32 %v404, 30
  %v406 = vsub.s32 %v402, %v405
  %vm407 = vcmp.lt.s32.totalorder %v406, 0
  %v408 = vsub.s32 0, %v406
  %v409 = vsel %vm407, %v408, %v406
  %v410 = vclz %v409
  %v411 = vsub.s32 %v410, 2
  %vm412 = vcmp.gt.s32.totalorder 0, %v411
  %v413 = vsel %vm412, 0, %v411
  %v414 = vsub.s32 32, %v413
  %v415 = vshll.u32 %v406, %v413
  %v416 = vshrl.u32 %v398, %v414
  %v417 = vor.u32 %v415, %v416
  %v418 = vsub.s32 4294967266, %v413
  %v419 = vadd.s32 %v418, 127
  %v420 = vshll.u32 %v419, 23
  %v421 = vor.u32 4788187, %v420
  %v422 = vand.u32 2147483647, %v421
  %v424 = vcvt.s32.f32 %v417
  %v425 = vmul.f32 %v424, %v422
  %v426 = vxor.u32 %v425, 2147483648
  %v427 = vsel %vm306, %v426, %v425
  %v428 = vsub.s32 4, %v404
  %v429 = vsel %vm306, %v428, %v404
  %v430 = vsel %vm305, %v146, %v427
  %v431 = vsel %vm305, 0, %v429
  %v432 = vmul.f32 %v430, %v430
  %v433 = vmul.f32 %v432, -0.001358992
  %v434 = vadd.f32 %v433, 0.041655596
  %v435 = vmul.f32 %v432, %v434
  %v436 = vadd.f32 %v435, -0.4999988
  %v437 = vmul.f32 %v432, %v436
  %v438 = vadd.f32 1.0, %v437
  %v439 = vmul.f32 %v430, %v430
  %v440 = vmul.f32 %v439, -0.00019511016
  %v441 = vadd.f32 %v440, 0.008332121
  %v442 = vmul.f32 %v439, %v441
  %v443 = vadd.f32 %v442, -0.16666654
  %v444 = vmul.f32 %v439, %v443
  %v445 = vadd.f32 %v444, 1.0
  %v446 = vmul.f32 %v445, %v430
  %vm447 = vweird.f32 %v146
  %v448 = vadd.s32 %v431, 3
  %v449 = vand.u32 %v448, 3
  %vm450 = vcmp.lt.s32.totalorder %v449, 2
  %vm451 = vcmp.eq.s32.totalorder %v449, 0
  %v452 = vxor.u32 %v446, 2147483648
  %v453 = vsel %vm451, %v438, %v452
  %vm454 = vcmp.eq.s32.totalorder %v449, 2
  %v455 = vxor.u32 %v438, 2147483648
  %v456 = vsel %vm454, %v455, %v446
  %v457 = vsel %vm450, %v453, %v456
  %v458 = vsel %vm447, nan, %v457
  %v459 = vand.u32 2147483647, %v147
  %vm460 = vcmp.le.f32.partialorder %v459, 0.7853982
  %vm461 = vcmp.lt.s32.totalorder %v147, 0
  %v462 = vand.u32 %v147, 2139095040
  %v463 = vshrl.u32 %v462, 23
  %v464 = vsub.s32 %v463, 127
  %v465 = vand.u32 2147483647, %v147
  %v466 = vand.u32 %v465, 8388607
  %v467 = vor.u32 %v466, 8388608
  %v468 = vsub.s32 0, %v467
  %v469 = vadd.s32 %v464, 1
  %vm470 = vcmp.gt.s32.totalorder %v469, 0
  %v471 = vsel %vm470, %v469, 0
  %v472 = vshrl.u32 %v471, 5
  %v473 = vand.u32 %v471, 31
  %v474 = vsub.s32 32, %v473
  %v475 = vshrl.u32 683565275, %v474
  %v476 = vshll.u32 683565275, %v473
  %v477 = vshrl.u32 2475754826, %v474
  %v478 = vor.u32 %v476, %v477
  %v479 = vshll.u32 2475754826, %v473
  %v480 = vshrl.u32 2131351028, %v474
  %v481 = vor.u32 %v479, %v480
  %v482 = vshll.u32 2131351028, %v473
  %v483 = vshrl.u32 2102212464, %v474
  %v484 = vor.u32 %v482, %v483
  %v485 = vshll.u32 2102212464, %v473
  %v486 = vshrl.u32 920167782, %v474
  %v487 = vor.u32 %v485, %v486
  %v488 = vshll.u32 920167782, %v473
  %v489 = vshrl.u32 1326507024, %v474
  %v490 = vor.u32 %v488, %v489
  %vm491 = vcmp.lt.s32.totalorder %v472, 1
  %vm492 = vcmp.lt.s32.totalorder %v472, 2
  %vm493 = vcmp.lt.s32.totalorder %v472, 3
  %vm494 = vcmp.lt.s32.totalorder %v472, 4
  %v495 = vsel %vm491, %v475, %v478
  %v496 = vsel %vm494, %v484, 2102212464
  %v497 = vsel %vm493, %v481, %v496
  %v498 = vsel %vm492, %v495, %v497
  %v499 = vsel %vm491, %v478, %v481
  %v500 = vsel %vm494, %v487, 920167782
  %v501 = vsel %vm493, %v484, %v500
  %v502 = vsel %vm492, %v499, %v501
  %v503 = vsel %vm491, %v481, %v484
  %v504 = vsel %vm494, %v490, 1326507024
  %v505 = vsel %vm493, %v487, %v504
  %v506 = vsel %vm492, %v503, %v505
  %v507 = vshll.u32 %v467, 8
  %v508 = vand.u32 %v507, 65535
  %v509 = vshrl.u32 %v507, 16
  %v510 = vand.u32 %v506, 65535
  %v511 = vshrl.u32 %v506, 16
  %v512 = vmul.u32 %v508, %v510
  %v513 = vmul.u32 %v508, %v511
  %v514 = vmul.u32 %v509, %v510
  %v515 = vmul.u32 %v509, %v511
  %v516 = vshll.u32 %v513, 16
  %v517 = vshrl.u32 %v513, 16
  %v518 = vshll.u32 %v514, 16
  %v519 = vshrl.u32 %v514, 16
  %vm520 = vc.u32 %v512, %v516
  %v521 = vsel %vm520, 1, 0
  %v522 = vadd.s32 %v512, %v516
  %v523 = vadd.s32 %v515, %v521
  %vm524 = vc.u32 %v522, %v518
  %v525 = vsel %vm524, 1, 0
  %v526 = vadd.s32 %v522, %v518
  %v527 = vadd.s32 %v523, %v525
  %v528 = vadd.s32 %v527, %v517
  %v529 = vadd.s32 %v528, %v519
  %v530 = vand.u32 %v507, 65535
  %v531 = vshrl.u32 %v507, 16
  %v532 = vand.u32 %v502, 65535
  %v533 = vshrl.u32 %v502, 16
  %v534 = vmul.u32 %v530, %v532
  %v535 = vmul.u32 %v530, %v533
  %v536 = vmul.u32 %v531, %v532
  %v537 = vmul.u32 %v531, %v533
  %v538 = vshll.u32 %v535, 16
  %v539 = vshrl.u32 %v535, 16
  %v540 = vshll.u32 %v536, 16
  %v541 = vshrl.u32 %v536, 16
  %vm542 = vc.u32 %v534, %v538
  %v543 = vsel %vm542, 1, 0
  %v544 = vadd.s32 %v534, %v538
  %v545 = vadd.s32 %v537, %v543
  %vm546 = vc.u32 %v544, %v540
  %v547 = vsel %vm546, 1, 0
  %v548 = vadd.s32 %v544, %v540
  %v549 = vadd.s32 %v545, %v547
  %v550 = vadd.s32 %v549, %v539
  %v551 = vadd.s32 %v550, %v541
  %v552 = vmul.u32 %v507, %v498
  %v553 = vadd.s32 %v529, %v548
  %vm554 = vc.u32 %v529, %v548
  %v555 = vadd.s32 %v551, 1
  %v556 = vsel %vm554, %v555, %v551
  %v557 = vadd.s32 %v552, %v556
  %v558 = vadd.s32 %v557, 536870912
  %v559 = vshrl.u32 %v558, 30
  %v560 = vshll.u32 %v559, 30
  %v561 = vsub.s32 %v557, %v560
  %vm562 = vcmp.lt.s32.totalorder %v561, 0
  %v563 = vsub.s32 0, %v561
  %v564 = vsel %vm562, %v563, %v561
  %v565 = vclz %v564
  %v566 = vsub.s32 %v565, 2
  %vm567 = vcmp.gt.s32.totalorder 0, %v566
  %v568 = vsel %vm567, 0, %v566
  %v569 = vsub.s32 32, %v568
  %v570 = vshll.u32 %v561, %v568
  %v571 = vshrl.u32 %v553, %v569
  %v572 = vor.u32 %v570, %v571
  %v573 = vsub.s32 4294967266, %v568
  %v574 = vadd.s32 %v573, 127
  %v575 = vshll.u32 %v574, 23
  %v576 = vor.u32 4788187, %v575
  %v577 = vand.u32 2147483647, %v576
  %v579 = vcvt.s32.f32 %v572
  %v580 = vmul.f32 %v579, %v577
  %v581 = vxor.u32 %v580, 2147483648
  %v582 = vsel %vm461, %v581, %v580
  %v583 = vsub.s32 4, %v559
  %v584 = vsel %vm461, %v583, %v559
  %v585 = vsel %vm460, %v147, %v582
  %v586 = vsel %vm460, 0, %v584
  %v587 = vmul.f32 %v585, %v585
  %v588 = vmul.f32 %v587, -0.001358992
  %v589 = vadd.f32 %v588, 0.041655596
  %v590 = vmul.f32 %v587, %v589
  %v591 = vadd.f32 %v590, -0.4999988
  %v592 = vmul.f32 %v587, %v591
  %v593 = vadd.f32 1.0, %v592
  %v594 = vmul.f32 %v585, %v585
  %v595 = vmul.f32 %v594, -0.00019511016
  %v596 = vadd.f32 %v595, 0.008332121
  %v597 = vmul.f32 %v594, %v596
  %v598 = vadd.f32 %v597, -0.16666654
  %v599 = vmul.f32 %v594, %v598
  %v600 = vadd.f32 %v599, 1.0
  %v601 = vmul.f32 %v600, %v585
  %vm602 = vweird.f32 %v147
  %v603 = vadd.s32 %v586, 3
  %v604 = vand.u32 %v603, 3
  %vm605 = vcmp.lt.s32.totalorder %v604, 2
  %vm606 = vcmp.eq.s32.totalorder %v604, 0
  %v607 = vxor.u32 %v601, 2147483648
  %v608 = vsel %vm606, %v593, %v607
  %vm609 = vcmp.eq.s32.totalorder %v604, 2
  %v610 = vxor.u32 %v593, 2147483648
  %v611 = vsel %vm609, %v610, %v601
  %v612 = vsel %vm605, %v608, %v611
  %v613 = vsel %vm602, nan, %v612
  %v614 = vand.u32 2147483647, %v148
  %vm615 = vcmp.le.f32.partialorder %v614, 0.7853982
  %vm616 = vcmp.lt.s32.totalorder %v148, 0
  %v617 = vand.u32 %v148, 2139095040
  %v618 = vshrl.u32 %v617, 23
  %v619 = vsub.s32 %v618, 127
  %v620 = vand.u32 2147483647, %v148
  %v621 = vand.u32 %v620, 8388607
  %v622 = vor.u32 %v621, 8388608
  %v623 = vsub.s32 0, %v622
  %v624 = vadd.s32 %v619, 1
  %vm625 = vcmp.gt.s32.totalorder %v624, 0
  %v626 = vsel %vm625, %v624, 0
  %v627 = vshrl.u32 %v626, 5
  %v628 = vand.u32 %v626, 31
  %v629 = vsub.s32 32, %v628
  %v630 = vshrl.u32 683565275, %v629
  %v631 = vshll.u32 683565275, %v628
  %v632 = vshrl.u32 2475754826, %v629
  %v633 = vor.u32 %v631, %v632
  %v634 = vshll.u32 2475754826, %v628
  %v635 = vshrl.u32 2131351028, %v629
  %v636 = vor.u32 %v634, %v635
  %v637 = vshll.u32 2131351028, %v628
  %v638 = vshrl.u32 2102212464, %v629
  %v639 = vor.u32 %v637, %v638
  %v640 = vshll.u32 2102212464, %v628
  %v641 = vshrl.u32 920167782, %v629
  %v642 = vor.u32 %v640, %v641
  %v643 = vshll.u32 920167782, %v628
  %v644 = vshrl.u32 1326507024, %v629
  %v645 = vor.u32 %v643, %v644
  %vm646 = vcmp.lt.s32.totalorder %v627, 1
  %vm647 = vcmp.lt.s32.totalorder %v627, 2
  %vm648 = vcmp.lt.s32.totalorder %v627, 3
  %vm649 = vcmp.lt.s32.totalorder %v627, 4
  %v650 = vsel %vm646, %v630, %v633
  %v651 = vsel %vm649, %v639, 2102212464
  %v652 = vsel %vm648, %v636, %v651
  %v653 = vsel %vm647, %v650, %v652
  %v654 = vsel %vm646, %v633, %v636
  %v655 = vsel %vm649, %v642, 920167782
  %v656 = vsel %vm648, %v639, %v655
  %v657 = vsel %vm647, %v654, %v656
  %v658 = vsel %vm646, %v636, %v639
  %v659 = vsel %vm649, %v645, 1326507024
  %v660 = vsel %vm648, %v642, %v659
  %v661 = vsel %vm647, %v658, %v660
  %v662 = vshll.u32 %v622, 8
  %v663 = vand.u32 %v662, 65535
  %v664 = vshrl.u32 %v662, 16
  %v665 = vand.u32 %v661, 65535
  %v666 = vshrl.u32 %v661, 16
  %v667 = vmul.u32 %v663, %v665
  %v668 = vmul.u32 %v663, %v666
  %v669 = vmul.u32 %v664, %v665
  %v670 = vmul.u32 %v664, %v666
  %v671 = vshll.u32 %v668, 16
  %v672 = vshrl.u32 %v668, 16
  %v673 = vshll.u32 %v669, 16
  %v674 = vshrl.u32 %v669, 16
  %vm675 = vc.u32 %v667, %v671
  %v676 = vsel %vm675, 1, 0
  %v677 = vadd.s32 %v667, %v671
  %v678 = vadd.s32 %v670, %v676
  %vm679 = vc.u32 %v677, %v673
  %v680 = vsel %vm679, 1, 0
  %v681 = vadd.s32 %v677, %v673
  %v682 = vadd.s32 %v678, %v680
  %v683 = vadd.s32 %v682, %v672
  %v684 = vadd.s32 %v683, %v674
  %v685 = vand.u32 %v662, 65535
  %v686 = vshrl.u32 %v662, 16
  %v687 = vand.u32 %v657, 65535
  %v688 = vshrl.u32 %v657, 16
  %v689 = vmul.u32 %v685, %v687
  %v690 = vmul.u32 %v685, %v688
  %v691 = vmul.u32 %v686, %v687
  %v692 = vmul.u32 %v686, %v688
  %v693 = vshll.u32 %v690, 16
  %v694 = vshrl.u32 %v690, 16
  %v695 = vshll.u32 %v691, 16
  %v696 = vshrl.u32 %v691, 16
  %vm697 = vc.u32 %v689, %v693
  %v698 = vsel %vm697, 1, 0
  %v699 = vadd.s32 %v689, %v693
  %v700 = vadd.s32 %v692, %v698
  %vm701 = vc.u32 %v699, %v695
  %v702 = vsel %vm701, 1, 0
  %v703 = vadd.s32 %v699, %v695
  %v704 = vadd.s32 %v700, %v702
  %v705 = vadd.s32 %v704, %v694
  %v706 = vadd.s32 %v705, %v696
  %v707 = vmul.u32 %v662, %v653
  %v708 = vadd.s32 %v684, %v703
  %vm709 = vc.u32 %v684, %v703
  %v710 = vadd.s32 %v706, 1
  %v711 = vsel %vm709, %v710, %v706
  %v712 = vadd.s32 %v707, %v711
  %v713 = vadd.s32 %v712, 536870912
  %v714 = vshrl.u32 %v713, 30
  %v715 = vshll.u32 %v714, 30
  %v716 = vsub.s32 %v712, %v715
  %vm717 = vcmp.lt.s32.totalorder %v716, 0
  %v718 = vsub.s32 0, %v716
  %v719 = vsel %vm717, %v718, %v716
  %v720 = vclz %v719
  %v721 = vsub.s32 %v720, 2
  %vm722 = vcmp.gt.s32.totalorder 0, %v721
  %v723 = vsel %vm722, 0, %v721
  %v724 = vsub.s32 32, %v723
  %v725 = vshll.u32 %v716, %v723
  %v726 = vshrl.u32 %v708, %v724
  %v727 = vor.u32 %v725, %v726
  %v728 = vsub.s32 4294967266, %v723
  %v729 = vadd.s32 %v728, 127
  %v730 = vshll.u32 %v729, 23
  %v731 = vor.u32 4788187, %v730
  %v732 = vand.u32 2147483647, %v731
  %v734 = vcvt.s32.f32 %v727
  %v735 = vmul.f32 %v734, %v732
  %v736 = vxor.u32 %v735, 2147483648
  %v737 = vsel %vm616, %v736, %v735
  %v738 = vsub.s32 4, %v714
  %v739 = vsel %vm616, %v738, %v714
  %v740 = vsel %vm615, %v148, %v737
  %v741 = vsel %vm615, 0, %v739
  %v742 = vmul.f32 %v740, %v740
  %v743 = vmul.f32 %v742, -0.001358992
  %v744 = vadd.f32 %v743, 0.041655596
  %v745 = vmul.f32 %v742, %v744
  %v746 = vadd.f32 %v745, -0.4999988
  %v747 = vmul.f32 %v742, %v746
  %v748 = vadd.f32 1.0, %v747
  %v749 = vmul.f32 %v740, %v740
  %v750 = vmul.f32 %v749, -0.00019511016
  %v751 = vadd.f32 %v750, 0.008332121
  %v752 = vmul.f32 %v749, %v751
  %v753 = vadd.f32 %v752, -0.16666654
  %v754 = vmul.f32 %v749, %v753
  %v755 = vadd.f32 %v754, 1.0
  %v756 = vmul.f32 %v755, %v740
  %vm757 = vweird.f32 %v148
  %v758 = vadd.s32 %v741, 3
  %v759 = vand.u32 %v758, 3
  %vm760 = vcmp.lt.s32.totalorder %v759, 2
  %vm761 = vcmp.eq.s32.totalorder %v759, 0
  %v762 = vxor.u32 %v756, 2147483648
  %v763 = vsel %vm761, %v748, %v762
  %vm764 = vcmp.eq.s32.totalorder %v759, 2
  %v765 = vxor.u32 %v748, 2147483648
  %v766 = vsel %vm764, %v765, %v756
  %v767 = vsel %vm760, %v763, %v766
  %v768 = vsel %vm757, nan, %v767
  %770 = vset.pattern.permute.xlu0 0
  %771 = vperm.xlu0 %770, %v52
  %v772 = vpop.permute.xlu0 %771
  %775 = vset.pattern.permute.xlu0 0
  %776 = vperm.xlu0 %775, %v53
  %v777 = vpop.permute.xlu0 %776
  %780 = vset.pattern.permute.xlu0 0
  %781 = vperm.xlu0 %780, %v54
  %v782 = vpop.permute.xlu0 %781
  %785 = vset.pattern.permute.xlu0 0
  %786 = vperm.xlu0 %785, %v55
  %v787 = vpop.permute.xlu0 %786
  %vm789 = vcmask 244736
  %v791 = vsel %vm789, %v48, 0
  %v794 = vsel %vm789, %v49, 0
  %v797 = vsel %vm789, %v50, 0
  %v800 = vsel %vm789, %v51, 0
  %vm802 = vcmask 1045504
  %v804 = vsel %vm802, %v768, 0
  %806 = vmatpush.msra.mxu0 0.0
  %807 = vmatpush.msra.mxu0 0.0
  %808 = vmatpush.msra.mxu0 0.0
  %809 = vmatpush.msra.mxu0 0.0
  %810 = vmatpush.msra.mxu0 0.0
  %811 = vmatpush.msra.mxu0 0.0
  %812 = vmatpush.msra.mxu0 0.0
  %813 = vmatpush.msra.mxu0 0.0
  %814 = vmatpush.msra.mxu0 0.0
  %815 = vmatpush.msra.mxu0 0.0
  %816 = vmatpush.msra.mxu0 0.0
  %817 = vmatpush.msra.mxu0 0.0
  %v818 = vand.u32 %v804, 4294901760
  %819 = vmatpush.msra.mxu0 %v818
  %v820 = vand.u32 %v613, 4294901760
  %821 = vmatpush.msra.mxu0 %v820
  %v822 = vand.u32 %v458, 4294901760
  %823 = vmatpush.msra.mxu0 %v822
  %v824 = vand.u32 %v303, 4294901760
  %825 = vmatpush.msra.mxu0 %v824
  %v826 = vand.u32 %v791, 4294901760
  %v827 = vsub.f32 %v791, %v826
  %v828 = vand.u32 %v827, 4294901760
  %v829 = vsub.f32 %v827, %v828
  %v830 = vand.u32 %v829, 4294901760
  %831 = vmatmul.f32.gmra.mxu0 %v830
  %v832 = vpop.f32.mrf.mxu0
  %v833 = vadd.f32 %v772, %v832
  %v834 = vand.u32 %v794, 4294901760
  %v835 = vsub.f32 %v794, %v834
  %v836 = vand.u32 %v835, 4294901760
  %v837 = vsub.f32 %v835, %v836
  %v838 = vand.u32 %v837, 4294901760
  %839 = vmatmul.f32.gmra.mxu0 %v838
  %v840 = vpop.f32.mrf.mxu0
  %v841 = vadd.f32 %v777, %v840
  %v842 = vand.u32 %v797, 4294901760
  %v843 = vsub.f32 %v797, %v842
  %v844 = vand.u32 %v843, 4294901760
  %v845 = vsub.f32 %v843, %v844
  %v846 = vand.u32 %v845, 4294901760
  %847 = vmatmul.f32.gmra.mxu0 %v846
  %v848 = vpop.f32.mrf.mxu0
  %v849 = vadd.f32 %v782, %v848
  %v850 = vand.u32 %v800, 4294901760
  %v851 = vsub.f32 %v800, %v850
  %v852 = vand.u32 %v851, 4294901760
  %v853 = vsub.f32 %v851, %v852
  %v854 = vand.u32 %v853, 4294901760
  %855 = vmatmul.f32.gmra.mxu0 %v854
  %v856 = vpop.f32.mrf.mxu0
  %v857 = vadd.f32 %v787, %v856
  %858 = vdwg.mxu0
  %859 = vmatpush.msra.mxu0 0.0
  %860 = vmatpush.msra.mxu0 0.0
  %861 = vmatpush.msra.mxu0 0.0
  %862 = vmatpush.msra.mxu0 0.0
  %863 = vmatpush.msra.mxu0 0.0
  %864 = vmatpush.msra.mxu0 0.0
  %865 = vmatpush.msra.mxu0 0.0
  %866 = vmatpush.msra.mxu0 0.0
  %867 = vmatpush.msra.mxu0 0.0
  %868 = vmatpush.msra.mxu0 0.0
  %869 = vmatpush.msra.mxu0 0.0
  %870 = vmatpush.msra.mxu0 0.0
  %v871 = vand.u32 %v804, 4294901760
  %v872 = vsub.f32 %v804, %v871
  %v873 = vand.u32 %v872, 4294901760
  %v874 = vsub.f32 %v872, %v873
  %v875 = vand.u32 %v874, 4294901760
  %876 = vmatpush.msra.mxu0 %v875
  %v877 = vand.u32 %v613, 4294901760
  %v878 = vsub.f32 %v613, %v877
  %v879 = vand.u32 %v878, 4294901760
  %v880 = vsub.f32 %v878, %v879
  %v881 = vand.u32 %v880, 4294901760
  %882 = vmatpush.msra.mxu0 %v881
  %v883 = vand.u32 %v458, 4294901760
  %v884 = vsub.f32 %v458, %v883
  %v885 = vand.u32 %v884, 4294901760
  %v886 = vsub.f32 %v884, %v885
  %v887 = vand.u32 %v886, 4294901760
  %888 = vmatpush.msra.mxu0 %v887
  %v889 = vand.u32 %v303, 4294901760
  %v890 = vsub.f32 %v303, %v889
  %v891 = vand.u32 %v890, 4294901760
  %v892 = vsub.f32 %v890, %v891
  %v893 = vand.u32 %v892, 4294901760
  %894 = vmatpush.msra.mxu0 %v893
  %v895 = vand.u32 %v791, 4294901760
  %896 = vmatmul.f32.gmra.mxu0 %v895
  %v897 = vpop.f32.mrf.mxu0
  %v898 = vadd.f32 %v833, %v897
  %v899 = vand.u32 %v794, 4294901760
  %900 = vmatmul.f32.gmra.mxu0 %v899
  %v901 = vpop.f32.mrf.mxu0
  %v902 = vadd.f32 %v841, %v901
  %v903 = vand.u32 %v797, 4294901760
  %904 = vmatmul.f32.gmra.mxu0 %v903
  %v905 = vpop.f32.mrf.mxu0
  %v906 = vadd.f32 %v849, %v905
  %v907 = vand.u32 %v800, 4294901760
  %908 = vmatmul.f32.gmra.mxu0 %v907
  %v909 = vpop.f32.mrf.mxu0
  %v910 = vadd.f32 %v857, %v909
  %911 = vdwg.mxu0
  %912 = vmatpush.msra.mxu0 0.0
  %913 = vmatpush.msra.mxu0 0.0
  %914 = vmatpush.msra.mxu0 0.0
  %915 = vmatpush.msra.mxu0 0.0
  %916 = vmatpush.msra.mxu0 0.0
  %917 = vmatpush.msra.mxu0 0.0
  %918 = vmatpush.msra.mxu0 0.0
  %919 = vmatpush.msra.mxu0 0.0
  %920 = vmatpush.msra.mxu0 0.0
  %921 = vmatpush.msra.mxu0 0.0
  %922 = vmatpush.msra.mxu0 0.0
  %923 = vmatpush.msra.mxu0 0.0
  %v924 = vand.u32 %v804, 4294901760
  %v925 = vsub.f32 %v804, %v924
  %926 = vmatpush.msra.mxu0 %v925
  %v927 = vand.u32 %v613, 4294901760
  %v928 = vsub.f32 %v613, %v927
  %929 = vmatpush.msra.mxu0 %v928
  %v930 = vand.u32 %v458, 4294901760
  %v931 = vsub.f32 %v458, %v930
  %932 = vmatpush.msra.mxu0 %v931
  %v933 = vand.u32 %v303, 4294901760
  %v934 = vsub.f32 %v303, %v933
  %935 = vmatpush.msra.mxu0 %v934
  %v936 = vand.u32 %v791, 4294901760
  %v937 = vsub.f32 %v791, %v936
  %938 = vmatmul.f32.gmra.mxu0 %v937
  %v939 = vpop.f32.mrf.mxu0
  %v940 = vadd.f32 %v898, %v939
  %v941 = vand.u32 %v794, 4294901760
  %v942 = vsub.f32 %v794, %v941
  %943 = vmatmul.f32.gmra.mxu0 %v942
  %v944 = vpop.f32.mrf.mxu0
  %v945 = vadd.f32 %v902, %v944
  %v946 = vand.u32 %v797, 4294901760
  %v947 = vsub.f32 %v797, %v946
  %948 = vmatmul.f32.gmra.mxu0 %v947
  %v949 = vpop.f32.mrf.mxu0
  %v950 = vadd.f32 %v906, %v949
  %v951 = vand.u32 %v800, 4294901760
  %v952 = vsub.f32 %v800, %v951
  %953 = vmatmul.f32.gmra.mxu0 %v952
  %v954 = vpop.f32.mrf.mxu0
  %v955 = vadd.f32 %v910, %v954
  %956 = vdwg.mxu0
  %957 = vmatpush.msra.mxu0 0.0
  %958 = vmatpush.msra.mxu0 0.0
  %959 = vmatpush.msra.mxu0 0.0
  %960 = vmatpush.msra.mxu0 0.0
  %961 = vmatpush.msra.mxu0 0.0
  %962 = vmatpush.msra.mxu0 0.0
  %963 = vmatpush.msra.mxu0 0.0
  %964 = vmatpush.msra.mxu0 0.0
  %965 = vmatpush.msra.mxu0 0.0
  %966 = vmatpush.msra.mxu0 0.0
  %967 = vmatpush.msra.mxu0 0.0
  %968 = vmatpush.msra.mxu0 0.0
  %v969 = vand.u32 %v804, 4294901760
  %970 = vmatpush.msra.mxu0 %v969
  %v971 = vand.u32 %v613, 4294901760
  %972 = vmatpush.msra.mxu0 %v971
  %v973 = vand.u32 %v458, 4294901760
  %974 = vmatpush.msra.mxu0 %v973
  %v975 = vand.u32 %v303, 4294901760
  %976 = vmatpush.msra.mxu0 %v975
  %v977 = vand.u32 %v791, 4294901760
  %v978 = vsub.f32 %v791, %v977
  %v979 = vand.u32 %v978, 4294901760
  %980 = vmatmul.f32.gmra.mxu0 %v979
  %v981 = vpop.f32.mrf.mxu0
  %v982 = vadd.f32 %v940, %v981
  %v983 = vand.u32 %v794, 4294901760
  %v984 = vsub.f32 %v794, %v983
  %v985 = vand.u32 %v984, 4294901760
  %986 = vmatmul.f32.gmra.mxu0 %v985
  %v987 = vpop.f32.mrf.mxu0
  %v988 = vadd.f32 %v945, %v987
  %v989 = vand.u32 %v797, 4294901760
  %v990 = vsub.f32 %v797, %v989
  %v991 = vand.u32 %v990, 4294901760
  %992 = vmatmul.f32.gmra.mxu0 %v991
  %v993 = vpop.f32.mrf.mxu0
  %v994 = vadd.f32 %v950, %v993
  %v995 = vand.u32 %v800, 4294901760
  %v996 = vsub.f32 %v800, %v995
  %v997 = vand.u32 %v996, 4294901760
  %998 = vmatmul.f32.gmra.mxu0 %v997
  %v999 = vpop.f32.mrf.mxu0
  %v1000 = vadd.f32 %v955, %v999
  %1001 = vdwg.mxu0
  %1002 = vmatpush.msra.mxu0 0.0
  %1003 = vmatpush.msra.mxu0 0.0
  %1004 = vmatpush.msra.mxu0 0.0
  %1005 = vmatpush.msra.mxu0 0.0
  %1006 = vmatpush.msra.mxu0 0.0
  %1007 = vmatpush.msra.mxu0 0.0
  %1008 = vmatpush.msra.mxu0 0.0
  %1009 = vmatpush.msra.mxu0 0.0
  %1010 = vmatpush.msra.mxu0 0.0
  %1011 = vmatpush.msra.mxu0 0.0
  %1012 = vmatpush.msra.mxu0 0.0
  %1013 = vmatpush.msra.mxu0 0.0
  %v1014 = vand.u32 %v804, 4294901760
  %v1015 = vsub.f32 %v804, %v1014
  %v1016 = vand.u32 %v1015, 4294901760
  %1017 = vmatpush.msra.mxu0 %v1016
  %v1018 = vand.u32 %v613, 4294901760
  %v1019 = vsub.f32 %v613, %v1018
  %v1020 = vand.u32 %v1019, 4294901760
  %1021 = vmatpush.msra.mxu0 %v1020
  %v1022 = vand.u32 %v458, 4294901760
  %v1023 = vsub.f32 %v458, %v1022
  %v1024 = vand.u32 %v1023, 4294901760
  %1025 = vmatpush.msra.mxu0 %v1024
  %v1026 = vand.u32 %v303, 4294901760
  %v1027 = vsub.f32 %v303, %v1026
  %v1028 = vand.u32 %v1027, 4294901760
  %1029 = vmatpush.msra.mxu0 %v1028
  %v1030 = vand.u32 %v791, 4294901760
  %1031 = vmatmul.f32.gmra.mxu0 %v1030
  %v1032 = vpop.f32.mrf.mxu0
  %v1033 = vadd.f32 %v982, %v1032
  %v1034 = vand.u32 %v794, 4294901760
  %1035 = vmatmul.f32.gmra.mxu0 %v1034
  %v1036 = vpop.f32.mrf.mxu0
  %v1037 = vadd.f32 %v988, %v1036
  %v1038 = vand.u32 %v797, 4294901760
  %1039 = vmatmul.f32.gmra.mxu0 %v1038
  %v1040 = vpop.f32.mrf.mxu0
  %v1041 = vadd.f32 %v994, %v1040
  %v1042 = vand.u32 %v800, 4294901760
  %1043 = vmatmul.f32.gmra.mxu0 %v1042
  %v1044 = vpop.f32.mrf.mxu0
  %v1045 = vadd.f32 %v1000, %v1044
  %1046 = vdwg.mxu0
  %1047 = vmatpush.msra.mxu0 0.0
  %1048 = vmatpush.msra.mxu0 0.0
  %1049 = vmatpush.msra.mxu0 0.0
  %1050 = vmatpush.msra.mxu0 0.0
  %1051 = vmatpush.msra.mxu0 0.0
  %1052 = vmatpush.msra.mxu0 0.0
  %1053 = vmatpush.msra.mxu0 0.0
  %1054 = vmatpush.msra.mxu0 0.0
  %1055 = vmatpush.msra.mxu0 0.0
  %1056 = vmatpush.msra.mxu0 0.0
  %1057 = vmatpush.msra.mxu0 0.0
  %1058 = vmatpush.msra.mxu0 0.0
  %v1059 = vand.u32 %v804, 4294901760
  %1060 = vmatpush.msra.mxu0 %v1059
  %v1061 = vand.u32 %v613, 4294901760
  %1062 = vmatpush.msra.mxu0 %v1061
  %v1063 = vand.u32 %v458, 4294901760
  %1064 = vmatpush.msra.mxu0 %v1063
  %v1065 = vand.u32 %v303, 4294901760
  %1066 = vmatpush.msra.mxu0 %v1065
  %v1067 = vand.u32 %v791, 4294901760
  %1068 = vmatmul.f32.gmra.mxu0 %v1067
  %v1069 = vpop.f32.mrf.mxu0
  %v1070 = vadd.f32 %v1033, %v1069
  %v1071 = vand.u32 %v794, 4294901760
  %1072 = vmatmul.f32.gmra.mxu0 %v1071
  %v1073 = vpop.f32.mrf.mxu0
  %v1074 = vadd.f32 %v1037, %v1073
  %v1075 = vand.u32 %v797, 4294901760
  %1076 = vmatmul.f32.gmra.mxu0 %v1075
  %v1077 = vpop.f32.mrf.mxu0
  %v1078 = vadd.f32 %v1041, %v1077
  %v1079 = vand.u32 %v800, 4294901760
  %1080 = vmatmul.f32.gmra.mxu0 %v1079
  %v1081 = vpop.f32.mrf.mxu0
  %v1082 = vadd.f32 %v1045, %v1081
  %1083 = vdwg.mxu0
  %v1084 = vtanh.pop %v1070
  %v1085 = vtanh.pop %v1074
  %v1086 = vtanh.pop %v1078
  %v1087 = vtanh.pop %v1082
  %1089 = vset.pattern.permute.xlu0 0
  %1090 = vperm.xlu0 %1089, %v60
  %v1091 = vpop.permute.xlu0 %1090
  %1094 = vset.pattern.permute.xlu0 0
  %1095 = vperm.xlu0 %1094, %v61
  %v1096 = vpop.permute.xlu0 %1095
  %1099 = vset.pattern.permute.xlu0 0
  %1100 = vperm.xlu0 %1099, %v62
  %v1101 = vpop.permute.xlu0 %1100
  %1104 = vset.pattern.permute.xlu0 0
  %1105 = vperm.xlu0 %1104, %v63
  %v1106 = vpop.permute.xlu0 %1105
  %v1109 = vsel %vm789, %v56, 0
  %v1112 = vsel %vm789, %v57, 0
  %v1115 = vsel %vm789, %v58, 0
  %v1118 = vsel %vm789, %v59, 0
  %v1121 = vsel %vm802, %v1087, 0
  %1123 = vmatpush.msra.mxu0 0.0
  %1124 = vmatpush.msra.mxu0 0.0
  %1125 = vmatpush.msra.mxu0 0.0
  %1126 = vmatpush.msra.mxu0 0.0
  %1127 = vmatpush.msra.mxu0 0.0
  %1128 = vmatpush.msra.mxu0 0.0
  %1129 = vmatpush.msra.mxu0 0.0
  %1130 = vmatpush.msra.mxu0 0.0
  %1131 = vmatpush.msra.mxu0 0.0
  %1132 = vmatpush.msra.mxu0 0.0
  %1133 = vmatpush.msra.mxu0 0.0
  %1134 = vmatpush.msra.mxu0 0.0
  %v1135 = vand.u32 %v1121, 4294901760
  %1136 = vmatpush.msra.mxu0 %v1135
  %v1137 = vand.u32 %v1086, 4294901760
  %1138 = vmatpush.msra.mxu0 %v1137
  %v1139 = vand.u32 %v1085, 4294901760
  %1140 = vmatpush.msra.mxu0 %v1139
  %v1141 = vand.u32 %v1084, 4294901760
  %1142 = vmatpush.msra.mxu0 %v1141
  %v1143 = vand.u32 %v1109, 4294901760
  %v1144 = vsub.f32 %v1109, %v1143
  %v1145 = vand.u32 %v1144, 4294901760
  %v1146 = vsub.f32 %v1144, %v1145
  %v1147 = vand.u32 %v1146, 4294901760
  %1148 = vmatmul.f32.gmra.mxu0 %v1147
  %v1149 = vpop.f32.mrf.mxu0
  %v1150 = vadd.f32 %v1091, %v1149
  %v1151 = vand.u32 %v1112, 4294901760
  %v1152 = vsub.f32 %v1112, %v1151
  %v1153 = vand.u32 %v1152, 4294901760
  %v1154 = vsub.f32 %v1152, %v1153
  %v1155 = vand.u32 %v1154, 4294901760
  %1156 = vmatmul.f32.gmra.mxu0 %v1155
  %v1157 = vpop.f32.mrf.mxu0
  %v1158 = vadd.f32 %v1096, %v1157
  %v1159 = vand.u32 %v1115, 4294901760
  %v1160 = vsub.f32 %v1115, %v1159
  %v1161 = vand.u32 %v1160, 4294901760
  %v1162 = vsub.f32 %v1160, %v1161
  %v1163 = vand.u32 %v1162, 4294901760
  %1164 = vmatmul.f32.gmra.mxu0 %v1163
  %v1165 = vpop.f32.mrf.mxu0
  %v1166 = vadd.f32 %v1101, %v1165
  %v1167 = vand.u32 %v1118, 4294901760
  %v1168 = vsub.f32 %v1118, %v1167
  %v1169 = vand.u32 %v1168, 4294901760
  %v1170 = vsub.f32 %v1168, %v1169
  %v1171 = vand.u32 %v1170, 4294901760
  %1172 = vmatmul.f32.gmra.mxu0 %v1171
  %v1173 = vpop.f32.mrf.mxu0
  %v1174 = vadd.f32 %v1106, %v1173
  %1175 = vdwg.mxu0
  %1176 = vmatpush.msra.mxu0 0.0
  %1177 = vmatpush.msra.mxu0 0.0
  %1178 = vmatpush.msra.mxu0 0.0
  %1179 = vmatpush.msra.mxu0 0.0
  %1180 = vmatpush.msra.mxu0 0.0
  %1181 = vmatpush.msra.mxu0 0.0
  %1182 = vmatpush.msra.mxu0 0.0
  %1183 = vmatpush.msra.mxu0 0.0
  %1184 = vmatpush.msra.mxu0 0.0
  %1185 = vmatpush.msra.mxu0 0.0
  %1186 = vmatpush.msra.mxu0 0.0
  %1187 = vmatpush.msra.mxu0 0.0
  %v1188 = vand.u32 %v1121, 4294901760
  %v1189 = vsub.f32 %v1121, %v1188
  %v1190 = vand.u32 %v1189, 4294901760
  %v1191 = vsub.f32 %v1189, %v1190
  %v1192 = vand.u32 %v1191, 4294901760
  %1193 = vmatpush.msra.mxu0 %v1192
  %v1194 = vand.u32 %v1086, 4294901760
  %v1195 = vsub.f32 %v1086, %v1194
  %v1196 = vand.u32 %v1195, 4294901760
  %v1197 = vsub.f32 %v1195, %v1196
  %v1198 = vand.u32 %v1197, 4294901760
  %1199 = vmatpush.msra.mxu0 %v1198
  %v1200 = vand.u32 %v1085, 4294901760
  %v1201 = vsub.f32 %v1085, %v1200
  %v1202 = vand.u32 %v1201, 4294901760
  %v1203 = vsub.f32 %v1201, %v1202
  %v1204 = vand.u32 %v1203, 4294901760
  %1205 = vmatpush.msra.mxu0 %v1204
  %v1206 = vand.u32 %v1084, 4294901760
  %v1207 = vsub.f32 %v1084, %v1206
  %v1208 = vand.u32 %v1207, 4294901760
  %v1209 = vsub.f32 %v1207, %v1208
  %v1210 = vand.u32 %v1209, 4294901760
  %1211 = vmatpush.msra.mxu0 %v1210
  %v1212 = vand.u32 %v1109, 4294901760
  %1213 = vmatmul.f32.gmra.mxu0 %v1212
  %v1214 = vpop.f32.mrf.mxu0
  %v1215 = vadd.f32 %v1150, %v1214
  %v1216 = vand.u32 %v1112, 4294901760
  %1217 = vmatmul.f32.gmra.mxu0 %v1216
  %v1218 = vpop.f32.mrf.mxu0
  %v1219 = vadd.f32 %v1158, %v1218
  %v1220 = vand.u32 %v1115, 4294901760
  %1221 = vmatmul.f32.gmra.mxu0 %v1220
  %v1222 = vpop.f32.mrf.mxu0
  %v1223 = vadd.f32 %v1166, %v1222
  %v1224 = vand.u32 %v1118, 4294901760
  %1225 = vmatmul.f32.gmra.mxu0 %v1224
  %v1226 = vpop.f32.mrf.mxu0
  %v1227 = vadd.f32 %v1174, %v1226
  %1228 = vdwg.mxu0
  %1229 = vmatpush.msra.mxu0 0.0
  %1230 = vmatpush.msra.mxu0 0.0
  %1231 = vmatpush.msra.mxu0 0.0
  %1232 = vmatpush.msra.mxu0 0.0
  %1233 = vmatpush.msra.mxu0 0.0
  %1234 = vmatpush.msra.mxu0 0.0
  %1235 = vmatpush.msra.mxu0 0.0
  %1236 = vmatpush.msra.mxu0 0.0
  %1237 = vmatpush.msra.mxu0 0.0
  %1238 = vmatpush.msra.mxu0 0.0
  %1239 = vmatpush.msra.mxu0 0.0
  %1240 = vmatpush.msra.mxu0 0.0
  %v1241 = vand.u32 %v1121, 4294901760
  %v1242 = vsub.f32 %v1121, %v1241
  %1243 = vmatpush.msra.mxu0 %v1242
  %v1244 = vand.u32 %v1086, 4294901760
  %v1245 = vsub.f32 %v1086, %v1244
  %1246 = vmatpush.msra.mxu0 %v1245
  %v1247 = vand.u32 %v1085, 4294901760
  %v1248 = vsub.f32 %v1085, %v1247
  %1249 = vmatpush.msra.mxu0 %v1248
  %v1250 = vand.u32 %v1084, 4294901760
  %v1251 = vsub.f32 %v1084, %v1250
  %1252 = vmatpush.msra.mxu0 %v1251
  %v1253 = vand.u32 %v1109, 4294901760
  %v1254 = vsub.f32 %v1109, %v1253
  %1255 = vmatmul.f32.gmra.mxu0 %v1254
  %v1256 = vpop.f32.mrf.mxu0
  %v1257 = vadd.f32 %v1215, %v1256
  %v1258 = vand.u32 %v1112, 4294901760
  %v1259 = vsub.f32 %v1112, %v1258
  %1260 = vmatmul.f32.gmra.mxu0 %v1259
  %v1261 = vpop.f32.mrf.mxu0
  %v1262 = vadd.f32 %v1219, %v1261
  %v1263 = vand.u32 %v1115, 4294901760
  %v1264 = vsub.f32 %v1115, %v1263
  %1265 = vmatmul.f32.gmra.mxu0 %v1264
  %v1266 = vpop.f32.mrf.mxu0
  %v1267 = vadd.f32 %v1223, %v1266
  %v1268 = vand.u32 %v1118, 4294901760
  %v1269 = vsub.f32 %v1118, %v1268
  %1270 = vmatmul.f32.gmra.mxu0 %v1269
  %v1271 = vpop.f32.mrf.mxu0
  %v1272 = vadd.f32 %v1227, %v1271
  %1273 = vdwg.mxu0
  %1274 = vmatpush.msra.mxu0 0.0
  %1275 = vmatpush.msra.mxu0 0.0
  %1276 = vmatpush.msra.mxu0 0.0
  %1277 = vmatpush.msra.mxu0 0.0
  %1278 = vmatpush.msra.mxu0 0.0
  %1279 = vmatpush.msra.mxu0 0.0
  %1280 = vmatpush.msra.mxu0 0.0
  %1281 = vmatpush.msra.mxu0 0.0
  %1282 = vmatpush.msra.mxu0 0.0
  %1283 = vmatpush.msra.mxu0 0.0
  %1284 = vmatpush.msra.mxu0 0.0
  %1285 = vmatpush.msra.mxu0 0.0
  %v1286 = vand.u32 %v1121, 4294901760
  %1287 = vmatpush.msra.mxu0 %v1286
  %v1288 = vand.u32 %v1086, 4294901760
  %1289 = vmatpush.msra.mxu0 %v1288
  %v1290 = vand.u32 %v1085, 4294901760
  %1291 = vmatpush.msra.mxu0 %v1290
  %v1292 = vand.u32 %v1084, 4294901760
  %1293 = vmatpush.msra.mxu0 %v1292
  %v1294 = vand.u32 %v1109, 4294901760
  %v1295 = vsub.f32 %v1109, %v1294
  %v1296 = vand.u32 %v1295, 4294901760
  %1297 = vmatmul.f32.gmra.mxu0 %v1296
  %v1298 = vpop.f32.mrf.mxu0
  %v1299 = vadd.f32 %v1257, %v1298
  %v1300 = vand.u32 %v1112, 4294901760
  %v1301 = vsub.f32 %v1112, %v1300
  %v1302 = vand.u32 %v1301, 4294901760
  %1303 = vmatmul.f32.gmra.mxu0 %v1302
  %v1304 = vpop.f32.mrf.mxu0
  %v1305 = vadd.f32 %v1262, %v1304
  %v1306 = vand.u32 %v1115, 4294901760
  %v1307 = vsub.f32 %v1115, %v1306
  %v1308 = vand.u32 %v1307, 4294901760
  %1309 = vmatmul.f32.gmra.mxu0 %v1308
  %v1310 = vpop.f32.mrf.mxu0
  %v1311 = vadd.f32 %v1267, %v1310
  %v1312 = vand.u32 %v1118, 4294901760
  %v1313 = vsub.f32 %v1118, %v1312
  %v1314 = vand.u32 %v1313, 4294901760
  %1315 = vmatmul.f32.gmra.mxu0 %v1314
  %v1316 = vpop.f32.mrf.mxu0
  %v1317 = vadd.f32 %v1272, %v1316
  %1318 = vdwg.mxu0
  %1319 = vmatpush.msra.mxu0 0.0
  %1320 = vmatpush.msra.mxu0 0.0
  %1321 = vmatpush.msra.mxu0 0.0
  %1322 = vmatpush.msra.mxu0 0.0
  %1323 = vmatpush.msra.mxu0 0.0
  %1324 = vmatpush.msra.mxu0 0.0
  %1325 = vmatpush.msra.mxu0 0.0
  %1326 = vmatpush.msra.mxu0 0.0
  %1327 = vmatpush.msra.mxu0 0.0
  %1328 = vmatpush.msra.mxu0 0.0
  %1329 = vmatpush.msra.mxu0 0.0
  %1330 = vmatpush.msra.mxu0 0.0
  %v1331 = vand.u32 %v1121, 4294901760
  %v1332 = vsub.f32 %v1121, %v1331
  %v1333 = vand.u32 %v1332, 4294901760
  %1334 = vmatpush.msra.mxu0 %v1333
  %v1335 = vand.u32 %v1086, 4294901760
  %v1336 = vsub.f32 %v1086, %v1335
  %v1337 = vand.u32 %v1336, 4294901760
  %1338 = vmatpush.msra.mxu0 %v1337
  %v1339 = vand.u32 %v1085, 4294901760
  %v1340 = vsub.f32 %v1085, %v1339
  %v1341 = vand.u32 %v1340, 4294901760
  %1342 = vmatpush.msra.mxu0 %v1341
  %v1343 = vand.u32 %v1084, 4294901760
  %v1344 = vsub.f32 %v1084, %v1343
  %v1345 = vand.u32 %v1344, 4294901760
  %1346 = vmatpush.msra.mxu0 %v1345
  %v1347 = vand.u32 %v1109, 4294901760
  %1348 = vmatmul.f32.gmra.mxu0 %v1347
  %v1349 = vpop.f32.mrf.mxu0
  %v1350 = vadd.f32 %v1299, %v1349
  %v1351 = vand.u32 %v1112, 4294901760
  %1352 = vmatmul.f32.gmra.mxu0 %v1351
  %v1353 = vpop.f32.mrf.mxu0
  %v1354 = vadd.f32 %v1305, %v1353
  %v1355 = vand.u32 %v1115, 4294901760
  %1356 = vmatmul.f32.gmra.mxu0 %v1355
  %v1357 = vpop.f32.mrf.mxu0
  %v1358 = vadd.f32 %v1311, %v1357
  %v1359 = vand.u32 %v1118, 4294901760
  %1360 = vmatmul.f32.gmra.mxu0 %v1359
  %v1361 = vpop.f32.mrf.mxu0
  %v1362 = vadd.f32 %v1317, %v1361
  %1363 = vdwg.mxu0
  %1364 = vmatpush.msra.mxu0 0.0
  %1365 = vmatpush.msra.mxu0 0.0
  %1366 = vmatpush.msra.mxu0 0.0
  %1367 = vmatpush.msra.mxu0 0.0
  %1368 = vmatpush.msra.mxu0 0.0
  %1369 = vmatpush.msra.mxu0 0.0
  %1370 = vmatpush.msra.mxu0 0.0
  %1371 = vmatpush.msra.mxu0 0.0
  %1372 = vmatpush.msra.mxu0 0.0
  %1373 = vmatpush.msra.mxu0 0.0
  %1374 = vmatpush.msra.mxu0 0.0
  %1375 = vmatpush.msra.mxu0 0.0
  %v1376 = vand.u32 %v1121, 4294901760
  %1377 = vmatpush.msra.mxu0 %v1376
  %v1378 = vand.u32 %v1086, 4294901760
  %1379 = vmatpush.msra.mxu0 %v1378
  %v1380 = vand.u32 %v1085, 4294901760
  %1381 = vmatpush.msra.mxu0 %v1380
  %v1382 = vand.u32 %v1084, 4294901760
  %1383 = vmatpush.msra.mxu0 %v1382
  %v1384 = vand.u32 %v1109, 4294901760
  %1385 = vmatmul.f32.gmra.mxu0 %v1384
  %v1386 = vpop.f32.mrf.mxu0
  %v1387 = vadd.f32 %v1350, %v1386
  %v1388 = vand.u32 %v1112, 4294901760
  %1389 = vmatmul.f32.gmra.mxu0 %v1388
  %v1390 = vpop.f32.mrf.mxu0
  %v1391 = vadd.f32 %v1354, %v1390
  %v1392 = vand.u32 %v1115, 4294901760
  %1393 = vmatmul.f32.gmra.mxu0 %v1392
  %v1394 = vpop.f32.mrf.mxu0
  %v1395 = vadd.f32 %v1358, %v1394
  %v1396 = vand.u32 %v1118, 4294901760
  %1397 = vmatmul.f32.gmra.mxu0 %v1396
  %v1398 = vpop.f32.mrf.mxu0
  %v1399 = vadd.f32 %v1362, %v1398
  %1400 = vdwg.mxu0
  %v1401 = vtanh.pop %v1387
  %v1402 = vtanh.pop %v1391
  %v1403 = vtanh.pop %v1395
  %v1404 = vtanh.pop %v1399
  %1406 = vset.pattern.permute.xlu0 0
  %1407 = vperm.xlu0 %1406, %v68
  %v1408 = vpop.permute.xlu0 %1407
  %1411 = vset.pattern.permute.xlu0 0
  %1412 = vperm.xlu0 %1411, %v69
  %v1413 = vpop.permute.xlu0 %1412
  %1416 = vset.pattern.permute.xlu0 0
  %1417 = vperm.xlu0 %1416, %v70
  %v1418 = vpop.permute.xlu0 %1417
  %1421 = vset.pattern.permute.xlu0 0
  %1422 = vperm.xlu0 %1421, %v71
  %v1423 = vpop.permute.xlu0 %1422
  %v1426 = vsel %vm789, %v64, 0
  %v1429 = vsel %vm789, %v65, 0
  %v1432 = vsel %vm789, %v66, 0
  %v1435 = vsel %vm789, %v67, 0
  %v1438 = vsel %vm802, %v1404, 0
  %1440 = vmatpush.msra.mxu0 0.0
  %1441 = vmatpush.msra.mxu0 0.0
  %1442 = vmatpush.msra.mxu0 0.0
  %1443 = vmatpush.msra.mxu0 0.0
  %1444 = vmatpush.msra.mxu0 0.0
  %1445 = vmatpush.msra.mxu0 0.0
  %1446 = vmatpush.msra.mxu0 0.0
  %1447 = vmatpush.msra.mxu0 0.0
  %1448 = vmatpush.msra.mxu0 0.0
  %1449 = vmatpush.msra.mxu0 0.0
  %1450 = vmatpush.msra.mxu0 0.0
  %1451 = vmatpush.msra.mxu0 0.0
  %v1452 = vand.u32 %v1438, 4294901760
  %1453 = vmatpush.msra.mxu0 %v1452
  %v1454 = vand.u32 %v1403, 4294901760
  %1455 = vmatpush.msra.mxu0 %v1454
  %v1456 = vand.u32 %v1402, 4294901760
  %1457 = vmatpush.msra.mxu0 %v1456
  %v1458 = vand.u32 %v1401, 4294901760
  %1459 = vmatpush.msra.mxu0 %v1458
  %v1460 = vand.u32 %v1426, 4294901760
  %v1461 = vsub.f32 %v1426, %v1460
  %v1462 = vand.u32 %v1461, 4294901760
  %v1463 = vsub.f32 %v1461, %v1462
  %v1464 = vand.u32 %v1463, 4294901760
  %1465 = vmatmul.f32.gmra.mxu0 %v1464
  %v1466 = vpop.f32.mrf.mxu0
  %v1467 = vadd.f32 %v1408, %v1466
  %v1468 = vand.u32 %v1429, 4294901760
  %v1469 = vsub.f32 %v1429, %v1468
  %v1470 = vand.u32 %v1469, 4294901760
  %v1471 = vsub.f32 %v1469, %v1470
  %v1472 = vand.u32 %v1471, 4294901760
  %1473 = vmatmul.f32.gmra.mxu0 %v1472
  %v1474 = vpop.f32.mrf.mxu0
  %v1475 = vadd.f32 %v1413, %v1474
  %v1476 = vand.u32 %v1432, 4294901760
  %v1477 = vsub.f32 %v1432, %v1476
  %v1478 = vand.u32 %v1477, 4294901760
  %v1479 = vsub.f32 %v1477, %v1478
  %v1480 = vand.u32 %v1479, 4294901760
  %1481 = vmatmul.f32.gmra.mxu0 %v1480
  %v1482 = vpop.f32.mrf.mxu0
  %v1483 = vadd.f32 %v1418, %v1482
  %v1484 = vand.u32 %v1435, 4294901760
  %v1485 = vsub.f32 %v1435, %v1484
  %v1486 = vand.u32 %v1485, 4294901760
  %v1487 = vsub.f32 %v1485, %v1486
  %v1488 = vand.u32 %v1487, 4294901760
  %1489 = vmatmul.f32.gmra.mxu0 %v1488
  %v1490 = vpop.f32.mrf.mxu0
  %v1491 = vadd.f32 %v1423, %v1490
  %1492 = vdwg.mxu0
  %1493 = vmatpush.msra.mxu0 0.0
  %1494 = vmatpush.msra.mxu0 0.0
  %1495 = vmatpush.msra.mxu0 0.0
  %1496 = vmatpush.msra.mxu0 0.0
  %1497 = vmatpush.msra.mxu0 0.0
  %1498 = vmatpush.msra.mxu0 0.0
  %1499 = vmatpush.msra.mxu0 0.0
  %1500 = vmatpush.msra.mxu0 0.0
  %1501 = vmatpush.msra.mxu0 0.0
  %1502 = vmatpush.msra.mxu0 0.0
  %1503 = vmatpush.msra.mxu0 0.0
  %1504 = vmatpush.msra.mxu0 0.0
  %v1505 = vand.u32 %v1438, 4294901760
  %v1506 = vsub.f32 %v1438, %v1505
  %v1507 = vand.u32 %v1506, 4294901760
  %v1508 = vsub.f32 %v1506, %v1507
  %v1509 = vand.u32 %v1508, 4294901760
  %1510 = vmatpush.msra.mxu0 %v1509
  %v1511 = vand.u32 %v1403, 4294901760
  %v1512 = vsub.f32 %v1403, %v1511
  %v1513 = vand.u32 %v1512, 4294901760
  %v1514 = vsub.f32 %v1512, %v1513
  %v1515 = vand.u32 %v1514, 4294901760
  %1516 = vmatpush.msra.mxu0 %v1515
  %v1517 = vand.u32 %v1402, 4294901760
  %v1518 = vsub.f32 %v1402, %v1517
  %v1519 = vand.u32 %v1518, 4294901760
  %v1520 = vsub.f32 %v1518, %v1519
  %v1521 = vand.u32 %v1520, 4294901760
  %1522 = vmatpush.msra.mxu0 %v1521
  %v1523 = vand.u32 %v1401, 4294901760
  %v1524 = vsub.f32 %v1401, %v1523
  %v1525 = vand.u32 %v1524, 4294901760
  %v1526 = vsub.f32 %v1524, %v1525
  %v1527 = vand.u32 %v1526, 4294901760
  %1528 = vmatpush.msra.mxu0 %v1527
  %v1529 = vand.u32 %v1426, 4294901760
  %1530 = vmatmul.f32.gmra.mxu0 %v1529
  %v1531 = vpop.f32.mrf.mxu0
  %v1532 = vadd.f32 %v1467, %v1531
  %v1533 = vand.u32 %v1429, 4294901760
  %1534 = vmatmul.f32.gmra.mxu0 %v1533
  %v1535 = vpop.f32.mrf.mxu0
  %v1536 = vadd.f32 %v1475, %v1535
  %v1537 = vand.u32 %v1432, 4294901760
  %1538 = vmatmul.f32.gmra.mxu0 %v1537
  %v1539 = vpop.f32.mrf.mxu0
  %v1540 = vadd.f32 %v1483, %v1539
  %v1541 = vand.u32 %v1435, 4294901760
  %1542 = vmatmul.f32.gmra.mxu0 %v1541
  %v1543 = vpop.f32.mrf.mxu0
  %v1544 = vadd.f32 %v1491, %v1543
  %1545 = vdwg.mxu0
  %1546 = vmatpush.msra.mxu0 0.0
  %1547 = vmatpush.msra.mxu0 0.0
  %1548 = vmatpush.msra.mxu0 0.0
  %1549 = vmatpush.msra.mxu0 0.0
  %1550 = vmatpush.msra.mxu0 0.0
  %1551 = vmatpush.msra.mxu0 0.0
  %1552 = vmatpush.msra.mxu0 0.0
  %1553 = vmatpush.msra.mxu0 0.0
  %1554 = vmatpush.msra.mxu0 0.0
  %1555 = vmatpush.msra.mxu0 0.0
  %1556 = vmatpush.msra.mxu0 0.0
  %1557 = vmatpush.msra.mxu0 0.0
  %v1558 = vand.u32 %v1438, 4294901760
  %v1559 = vsub.f32 %v1438, %v1558
  %1560 = vmatpush.msra.mxu0 %v1559
  %v1561 = vand.u32 %v1403, 4294901760
  %v1562 = vsub.f32 %v1403, %v1561
  %1563 = vmatpush.msra.mxu0 %v1562
  %v1564 = vand.u32 %v1402, 4294901760
  %v1565 = vsub.f32 %v1402, %v1564
  %1566 = vmatpush.msra.mxu0 %v1565
  %v1567 = vand.u32 %v1401, 4294901760
  %v1568 = vsub.f32 %v1401, %v1567
  %1569 = vmatpush.msra.mxu0 %v1568
  %v1570 = vand.u32 %v1426, 4294901760
  %v1571 = vsub.f32 %v1426, %v1570
  %1572 = vmatmul.f32.gmra.mxu0 %v1571
  %v1573 = vpop.f32.mrf.mxu0
  %v1574 = vadd.f32 %v1532, %v1573
  %v1575 = vand.u32 %v1429, 4294901760
  %v1576 = vsub.f32 %v1429, %v1575
  %1577 = vmatmul.f32.gmra.mxu0 %v1576
  %v1578 = vpop.f32.mrf.mxu0
  %v1579 = vadd.f32 %v1536, %v1578
  %v1580 = vand.u32 %v1432, 4294901760
  %v1581 = vsub.f32 %v1432, %v1580
  %1582 = vmatmul.f32.gmra.mxu0 %v1581
  %v1583 = vpop.f32.mrf.mxu0
  %v1584 = vadd.f32 %v1540, %v1583
  %v1585 = vand.u32 %v1435, 4294901760
  %v1586 = vsub.f32 %v1435, %v1585
  %1587 = vmatmul.f32.gmra.mxu0 %v1586
  %v1588 = vpop.f32.mrf.mxu0
  %v1589 = vadd.f32 %v1544, %v1588
  %1590 = vdwg.mxu0
  %1591 = vmatpush.msra.mxu0 0.0
  %1592 = vmatpush.msra.mxu0 0.0
  %1593 = vmatpush.msra.mxu0 0.0
  %1594 = vmatpush.msra.mxu0 0.0
  %1595 = vmatpush.msra.mxu0 0.0
  %1596 = vmatpush.msra.mxu0 0.0
  %1597 = vmatpush.msra.mxu0 0.0
  %1598 = vmatpush.msra.mxu0 0.0
  %1599 = vmatpush.msra.mxu0 0.0
  %1600 = vmatpush.msra.mxu0 0.0
  %1601 = vmatpush.msra.mxu0 0.0
  %1602 = vmatpush.msra.mxu0 0.0
  %v1603 = vand.u32 %v1438, 4294901760
  %1604 = vmatpush.msra.mxu0 %v1603
  %v1605 = vand.u32 %v1403, 4294901760
  %1606 = vmatpush.msra.mxu0 %v1605
  %v1607 = vand.u32 %v1402, 4294901760
  %1608 = vmatpush.msra.mxu0 %v1607
  %v1609 = vand.u32 %v1401, 4294901760
  %1610 = vmatpush.msra.mxu0 %v1609
  %v1611 = vand.u32 %v1426, 4294901760
  %v1612 = vsub.f32 %v1426, %v1611
  %v1613 = vand.u32 %v1612, 4294901760
  %1614 = vmatmul.f32.gmra.mxu0 %v1613
  %v1615 = vpop.f32.mrf.mxu0
  %v1616 = vadd.f32 %v1574, %v1615
  %v1617 = vand.u32 %v1429, 4294901760
  %v1618 = vsub.f32 %v1429, %v1617
  %v1619 = vand.u32 %v1618, 4294901760
  %1620 = vmatmul.f32.gmra.mxu0 %v1619
  %v1621 = vpop.f32.mrf.mxu0
  %v1622 = vadd.f32 %v1579, %v1621
  %v1623 = vand.u32 %v1432, 4294901760
  %v1624 = vsub.f32 %v1432, %v1623
  %v1625 = vand.u32 %v1624, 4294901760
  %1626 = vmatmul.f32.gmra.mxu0 %v1625
  %v1627 = vpop.f32.mrf.mxu0
  %v1628 = vadd.f32 %v1584, %v1627
  %v1629 = vand.u32 %v1435, 4294901760
  %v1630 = vsub.f32 %v1435, %v1629
  %v1631 = vand.u32 %v1630, 4294901760
  %1632 = vmatmul.f32.gmra.mxu0 %v1631
  %v1633 = vpop.f32.mrf.mxu0
  %v1634 = vadd.f32 %v1589, %v1633
  %1635 = vdwg.mxu0
  %1636 = vmatpush.msra.mxu0 0.0
  %1637 = vmatpush.msra.mxu0 0.0
  %1638 = vmatpush.msra.mxu0 0.0
  %1639 = vmatpush.msra.mxu0 0.0
  %1640 = vmatpush.msra.mxu0 0.0
  %1641 = vmatpush.msra.mxu0 0.0
  %1642 = vmatpush.msra.mxu0 0.0
  %1643 = vmatpush.msra.mxu0 0.0
  %1644 = vmatpush.msra.mxu0 0.0
  %1645 = vmatpush.msra.mxu0 0.0
  %1646 = vmatpush.msra.mxu0 0.0
  %1647 = vmatpush.msra.mxu0 0.0
  %v1648 = vand.u32 %v1438, 4294901760
  %v1649 = vsub.f32 %v1438, %v1648
  %v1650 = vand.u32 %v1649, 4294901760
  %1651 = vmatpush.msra.mxu0 %v1650
  %v1652 = vand.u32 %v1403, 4294901760
  %v1653 = vsub.f32 %v1403, %v1652
  %v1654 = vand.u32 %v1653, 4294901760
  %1655 = vmatpush.msra.mxu0 %v1654
  %v1656 = vand.u32 %v1402, 4294901760
  %v1657 = vsub.f32 %v1402, %v1656
  %v1658 = vand.u32 %v1657, 4294901760
  %1659 = vmatpush.msra.mxu0 %v1658
  %v1660 = vand.u32 %v1401, 4294901760
  %v1661 = vsub.f32 %v1401, %v1660
  %v1662 = vand.u32 %v1661, 4294901760
  %1663 = vmatpush.msra.mxu0 %v1662
  %v1664 = vand.u32 %v1426, 4294901760
  %1665 = vmatmul.f32.gmra.mxu0 %v1664
  %v1666 = vpop.f32.mrf.mxu0
  %v1667 = vadd.f32 %v1616, %v1666
  %v1668 = vand.u32 %v1429, 4294901760
  %1669 = vmatmul.f32.gmra.mxu0 %v1668
  %v1670 = vpop.f32.mrf.mxu0
  %v1671 = vadd.f32 %v1622, %v1670
  %v1672 = vand.u32 %v1432, 4294901760
  %1673 = vmatmul.f32.gmra.mxu0 %v1672
  %v1674 = vpop.f32.mrf.mxu0
  %v1675 = vadd.f32 %v1628, %v1674
  %v1676 = vand.u32 %v1435, 4294901760
  %1677 = vmatmul.f32.gmra.mxu0 %v1676
  %v1678 = vpop.f32.mrf.mxu0
  %v1679 = vadd.f32 %v1634, %v1678
  %1680 = vdwg.mxu0
  %1681 = vmatpush.msra.mxu0 0.0
  %1682 = vmatpush.msra.mxu0 0.0
  %1683 = vmatpush.msra.mxu0 0.0
  %1684 = vmatpush.msra.mxu0 0.0
  %1685 = vmatpush.msra.mxu0 0.0
  %1686 = vmatpush.msra.mxu0 0.0
  %1687 = vmatpush.msra.mxu0 0.0
  %1688 = vmatpush.msra.mxu0 0.0
  %1689 = vmatpush.msra.mxu0 0.0
  %1690 = vmatpush.msra.mxu0 0.0
  %1691 = vmatpush.msra.mxu0 0.0
  %1692 = vmatpush.msra.mxu0 0.0
  %v1693 = vand.u32 %v1438, 4294901760
  %1694 = vmatpush.msra.mxu0 %v1693
  %v1695 = vand.u32 %v1403, 4294901760
  %1696 = vmatpush.msra.mxu0 %v1695
  %v1697 = vand.u32 %v1402, 4294901760
  %1698 = vmatpush.msra.mxu0 %v1697
  %v1699 = vand.u32 %v1401, 4294901760
  %1700 = vmatpush.msra.mxu0 %v1699
  %v1701 = vand.u32 %v1426, 4294901760
  %1702 = vmatmul.f32.gmra.mxu0 %v1701
  %v1703 = vpop.f32.mrf.mxu0
  %v1704 = vadd.f32 %v1667, %v1703
  %v1705 = vand.u32 %v1429, 4294901760
  %1706 = vmatmul.f32.gmra.mxu0 %v1705
  %v1707 = vpop.f32.mrf.mxu0
  %v1708 = vadd.f32 %v1671, %v1707
  %v1709 = vand.u32 %v1432, 4294901760
  %1710 = vmatmul.f32.gmra.mxu0 %v1709
  %v1711 = vpop.f32.mrf.mxu0
  %v1712 = vadd.f32 %v1675, %v1711
  %v1713 = vand.u32 %v1435, 4294901760
  %1714 = vmatmul.f32.gmra.mxu0 %v1713
  %v1715 = vpop.f32.mrf.mxu0
  %v1716 = vadd.f32 %v1679, %v1715
  %1717 = vdwg.mxu0
  %v1718 = vtanh.pop %v1704
  %v1719 = vtanh.pop %v1708
  %v1720 = vtanh.pop %v1712
  %v1721 = vtanh.pop %v1716
  %1723 = vset.pattern.permute.xlu0 0
  %1724 = vperm.xlu0 %1723, %v73
  %v1725 = vpop.permute.xlu0 %1724
  %v1727 = vperm.slane %v1725, 0
  %v1729 = vsel %vm789, %v72, 0
  %v1732 = vsel %vm802, %v1721, 0
  %1734 = vmatpush.msra.mxu0 0.0
  %1735 = vmatpush.msra.mxu0 0.0
  %1736 = vmatpush.msra.mxu0 0.0
  %1737 = vmatpush.msra.mxu0 0.0
  %1738 = vmatpush.msra.mxu0 0.0
  %1739 = vmatpush.msra.mxu0 0.0
  %1740 = vmatpush.msra.mxu0 0.0
  %1741 = vmatpush.msra.mxu0 0.0
  %1742 = vmatpush.msra.mxu0 0.0
  %1743 = vmatpush.msra.mxu0 0.0
  %1744 = vmatpush.msra.mxu0 0.0
  %1745 = vmatpush.msra.mxu0 0.0
  %v1746 = vand.u32 %v1732, 4294901760
  %1747 = vmatpush.msra.mxu0 %v1746
  %v1748 = vand.u32 %v1720, 4294901760
  %1749 = vmatpush.msra.mxu0 %v1748
  %v1750 = vand.u32 %v1719, 4294901760
  %1751 = vmatpush.msra.mxu0 %v1750
  %v1752 = vand.u32 %v1718, 4294901760
  %1753 = vmatpush.msra.mxu0 %v1752
  %v1754 = vand.u32 %v1729, 4294901760
  %v1755 = vsub.f32 %v1729, %v1754
  %v1756 = vand.u32 %v1755, 4294901760
  %v1757 = vsub.f32 %v1755, %v1756
  %v1758 = vand.u32 %v1757, 4294901760
  %1759 = vmatmul.f32.gmra.mxu0 %v1758
  %v1760 = vpop.f32.mrf.mxu0
  %v1761 = vadd.f32 %v1727, %v1760
  %1762 = vdwg.mxu0
  %1763 = vmatpush.msra.mxu0 0.0
  %1764 = vmatpush.msra.mxu0 0.0
  %1765 = vmatpush.msra.mxu0 0.0
  %1766 = vmatpush.msra.mxu0 0.0
  %1767 = vmatpush.msra.mxu0 0.0
  %1768 = vmatpush.msra.mxu0 0.0
  %1769 = vmatpush.msra.mxu0 0.0
  %1770 = vmatpush.msra.mxu0 0.0
  %1771 = vmatpush.msra.mxu0 0.0
  %1772 = vmatpush.msra.mxu0 0.0
  %1773 = vmatpush.msra.mxu0 0.0
  %1774 = vmatpush.msra.mxu0 0.0
  %v1775 = vand.u32 %v1732, 4294901760
  %v1776 = vsub.f32 %v1732, %v1775
  %v1777 = vand.u32 %v1776, 4294901760
  %v1778 = vsub.f32 %v1776, %v1777
  %v1779 = vand.u32 %v1778, 4294901760
  %1780 = vmatpush.msra.mxu0 %v1779
  %v1781 = vand.u32 %v1720, 4294901760
  %v1782 = vsub.f32 %v1720, %v1781
  %v1783 = vand.u32 %v1782, 4294901760
  %v1784 = vsub.f32 %v1782, %v1783
  %v1785 = vand.u32 %v1784, 4294901760
  %1786 = vmatpush.msra.mxu0 %v1785
  %v1787 = vand.u32 %v1719, 4294901760
  %v1788 = vsub.f32 %v1719, %v1787
  %v1789 = vand.u32 %v1788, 4294901760
  %v1790 = vsub.f32 %v1788, %v1789
  %v1791 = vand.u32 %v1790, 4294901760
  %1792 = vmatpush.msra.mxu0 %v1791
  %v1793 = vand.u32 %v1718, 4294901760
  %v1794 = vsub.f32 %v1718, %v1793
  %v1795 = vand.u32 %v1794, 4294901760
  %v1796 = vsub.f32 %v1794, %v1795
  %v1797 = vand.u32 %v1796, 4294901760
  %1798 = vmatpush.msra.mxu0 %v1797
  %v1799 = vand.u32 %v1729, 4294901760
  %1800 = vmatmul.f32.gmra.mxu0 %v1799
  %v1801 = vpop.f32.mrf.mxu0
  %v1802 = vadd.f32 %v1761, %v1801
  %1803 = vdwg.mxu0
  %1804 = vmatpush.msra.mxu0 0.0
  %1805 = vmatpush.msra.mxu0 0.0
  %1806 = vmatpush.msra.mxu0 0.0
  %1807 = vmatpush.msra.mxu0 0.0
  %1808 = vmatpush.msra.mxu0 0.0
  %1809 = vmatpush.msra.mxu0 0.0
  %1810 = vmatpush.msra.mxu0 0.0
  %1811 = vmatpush.msra.mxu0 0.0
  %1812 = vmatpush.msra.mxu0 0.0
  %1813 = vmatpush.msra.mxu0 0.0
  %1814 = vmatpush.msra.mxu0 0.0
  %1815 = vmatpush.msra.mxu0 0.0
  %v1816 = vand.u32 %v1732, 4294901760
  %v1817 = vsub.f32 %v1732, %v1816
  %1818 = vmatpush.msra.mxu0 %v1817
  %v1819 = vand.u32 %v1720, 4294901760
  %v1820 = vsub.f32 %v1720, %v1819
  %1821 = vmatpush.msra.mxu0 %v1820
  %v1822 = vand.u32 %v1719, 4294901760
  %v1823 = vsub.f32 %v1719, %v1822
  %1824 = vmatpush.msra.mxu0 %v1823
  %v1825 = vand.u32 %v1718, 4294901760
  %v1826 = vsub.f32 %v1718, %v1825
  %1827 = vmatpush.msra.mxu0 %v1826
  %v1828 = vand.u32 %v1729, 4294901760
  %v1829 = vsub.f32 %v1729, %v1828
  %1830 = vmatmul.f32.gmra.mxu0 %v1829
  %v1831 = vpop.f32.mrf.mxu0
  %v1832 = vadd.f32 %v1802, %v1831
  %1833 = vdwg.mxu0
  %1834 = vmatpush.msra.mxu0 0.0
  %1835 = vmatpush.msra.mxu0 0.0
  %1836 = vmatpush.msra.mxu0 0.0
  %1837 = vmatpush.msra.mxu0 0.0
  %1838 = vmatpush.msra.mxu0 0.0
  %1839 = vmatpush.msra.mxu0 0.0
  %1840 = vmatpush.msra.mxu0 0.0
  %1841 = vmatpush.msra.mxu0 0.0
  %1842 = vmatpush.msra.mxu0 0.0
  %1843 = vmatpush.msra.mxu0 0.0
  %1844 = vmatpush.msra.mxu0 0.0
  %1845 = vmatpush.msra.mxu0 0.0
  %v1846 = vand.u32 %v1732, 4294901760
  %1847 = vmatpush.msra.mxu0 %v1846
  %v1848 = vand.u32 %v1720, 4294901760
  %1849 = vmatpush.msra.mxu0 %v1848
  %v1850 = vand.u32 %v1719, 4294901760
  %1851 = vmatpush.msra.mxu0 %v1850
  %v1852 = vand.u32 %v1718, 4294901760
  %1853 = vmatpush.msra.mxu0 %v1852
  %v1854 = vand.u32 %v1729, 4294901760
  %v1855 = vsub.f32 %v1729, %v1854
  %v1856 = vand.u32 %v1855, 4294901760
  %1857 = vmatmul.f32.gmra.mxu0 %v1856
  %v1858 = vpop.f32.mrf.mxu0
  %v1859 = vadd.f32 %v1832, %v1858
  %1860 = vdwg.mxu0
  %1861 = vmatpush.msra.mxu0 0.0
  %1862 = vmatpush.msra.mxu0 0.0
  %1863 = vmatpush.msra.mxu0 0.0
  %1864 = vmatpush.msra.mxu0 0.0
  %1865 = vmatpush.msra.mxu0 0.0
  %1866 = vmatpush.msra.mxu0 0.0
  %1867 = vmatpush.msra.mxu0 0.0
  %1868 = vmatpush.msra.mxu0 0.0
  %1869 = vmatpush.msra.mxu0 0.0
  %1870 = vmatpush.msra.mxu0 0.0
  %1871 = vmatpush.msra.mxu0 0.0
  %1872 = vmatpush.msra.mxu0 0.0
  %v1873 = vand.u32 %v1732, 4294901760
  %v1874 = vsub.f32 %v1732, %v1873
  %v1875 = vand.u32 %v1874, 4294901760
  %1876 = vmatpush.msra.mxu0 %v1875
  %v1877 = vand.u32 %v1720, 4294901760
  %v1878 = vsub.f32 %v1720, %v1877
  %v1879 = vand.u32 %v1878, 4294901760
  %1880 = vmatpush.msra.mxu0 %v1879
  %v1881 = vand.u32 %v1719, 4294901760
  %v1882 = vsub.f32 %v1719, %v1881
  %v1883 = vand.u32 %v1882, 4294901760
  %1884 = vmatpush.msra.mxu0 %v1883
  %v1885 = vand.u32 %v1718, 4294901760
  %v1886 = vsub.f32 %v1718, %v1885
  %v1887 = vand.u32 %v1886, 4294901760
  %1888 = vmatpush.msra.mxu0 %v1887
  %v1889 = vand.u32 %v1729, 4294901760
  %1890 = vmatmul.f32.gmra.mxu0 %v1889
  %v1891 = vpop.f32.mrf.mxu0
  %v1892 = vadd.f32 %v1859, %v1891
  %1893 = vdwg.mxu0
  %1894 = vmatpush.msra.mxu0 0.0
  %1895 = vmatpush.msra.mxu0 0.0
  %1896 = vmatpush.msra.mxu0 0.0
  %1897 = vmatpush.msra.mxu0 0.0
  %1898 = vmatpush.msra.mxu0 0.0
  %1899 = vmatpush.msra.mxu0 0.0
  %1900 = vmatpush.msra.mxu0 0.0
  %1901 = vmatpush.msra.mxu0 0.0
  %1902 = vmatpush.msra.mxu0 0.0
  %1903 = vmatpush.msra.mxu0 0.0
  %1904 = vmatpush.msra.mxu0 0.0
  %1905 = vmatpush.msra.mxu0 0.0
  %v1906 = vand.u32 %v1732, 4294901760
  %1907 = vmatpush.msra.mxu0 %v1906
  %v1908 = vand.u32 %v1720, 4294901760
  %1909 = vmatpush.msra.mxu0 %v1908
  %v1910 = vand.u32 %v1719, 4294901760
  %1911 = vmatpush.msra.mxu0 %v1910
  %v1912 = vand.u32 %v1718, 4294901760
  %1913 = vmatpush.msra.mxu0 %v1912
  %v1914 = vand.u32 %v1729, 4294901760
  %1915 = vmatmul.f32.gmra.mxu0 %v1914
  %v1916 = vpop.f32.mrf.mxu0
  %v1917 = vadd.f32 %v1892, %v1916
  %1918 = vdwg.mxu0
  %1919 = vst [vmem:[%s11] sm:$0x1] %v1917
  // Predicated region
  $region46: #{network_model_forward.1} parent=0 // pred_check
    _
  $region47: #{network_model_forward.1} parent=0 // pred_check_branch
    %1921 = sbr.rel (0) target = $region49
  $region48: #{network_model_forward.1} parent=0 // pred_region
    _
  $region49: #{network_model_forward.1} parent=0 // pred_fallthru
    _
  // Predicated region
  $region50: #{network_model_forward.1} parent=0 // pred_check
    _
  $region51: #{network_model_forward.1} parent=0 // pred_check_branch
    %1923 = sbr.rel (0) target = $region53
  $region52: #{network_model_forward.1} parent=0 // pred_region
    _
  $region53: #{network_model_forward.1} parent=0 // pred_fallthru
    _

</llo_original>
